<compile_context>
chip_gen: v6e
topology: v6e:2x2x1
jax: 0.10.0
libtpu: 0.0.40
codegen_flags: <defaults>
</compile_context>

<pallas_src>
import functools

import jax
import jax.numpy as jnp
from jax import lax
from jax.experimental import pallas as pl
from jax.experimental.pallas import tpu as pltpu

C = 64          # channels (fixed by the module: Conv1d(64, 64, ...))
RED = 8         # CALayer reduction
B = 2           # batch
L = 128         # sequence length (lane-friendly)
PMAX = 3        # largest conv half-width (kernel 7 -> padding 3)


# ------------------------------ kernel ------------------------------

def _conv_stacked(x, w_big_ref, b_ref, masks, K):
    """'same'-padding Conv1d as a single MXU matmul.

    x:        (C, BB*L) f32 activations, batches concatenated along lanes.
    w_big:    (Cout, K*Cin) packed weights, tap-major column blocks.
    b:        (Cout, 1) bias.
    masks[d]: (C, BB*L) bool, True where a lane shift of d stays inside its batch segment.
    """
    P = (K - 1) // 2
    parts = []
    for k in range(K):                          # static, K <= 7
        d = k - P
        if d == 0:
            parts.append(x)
        else:
            rolled = pltpu.roll(x, shift=(-d) % x.shape[-1], axis=1)
            parts.append(jnp.where(masks[d], rolled, 0.0))
    x_big = jnp.concatenate(parts, axis=0)                               # (K*C, BB*L)
    out = jnp.dot(w_big_ref[...], x_big, preferred_element_type=jnp.float32)
    return out + b_ref[...]


def block_kernel(w1_ref, b1_ref, w2_ref, b2_ref, w3_ref, b3_ref,
                 wdu1_ref, bdu1_ref, wdu2_ref, bdu2_ref,
                 pool_ref, bcast_ref, x_ref, o_ref, *, seq_len):
    x = x_ref[...].astype(jnp.float32)                                   # (C, BB*L)
    res = x

    # Shift-validity masks: built once and reused by all taps of all three convs.
    col = lax.broadcasted_iota(jnp.int32, x.shape, 1)
    if seq_len & (seq_len - 1) == 0:
        lpos = jnp.bitwise_and(col, seq_len - 1)      # position inside each batch segment
    else:
        lpos = col % seq_len
    masks = {}
    for d in range(-PMAX, PMAX + 1):
        if d != 0:
            masks[d] = jnp.logical_and(lpos + d >= 0, lpos + d < seq_len)

    h = jnp.maximum(_conv_stacked(x, w1_ref, b1_ref, masks, 7), 0.0)
    h = jnp.maximum(_conv_stacked(h, w2_ref, b2_ref, masks, 5), 0.0)
    h = jnp.maximum(_conv_stacked(h, w3_ref, b3_ref, masks, 3), 0.0)

    # CALayer, batched over the lane-concatenated batch:
    #   pool_ref  (BB*L, 128): column b holds 1/L over batch b's lanes  -> y[:, b] = per-batch mean
    #   bcast_ref (128, BB*L): row b is the 0/1 indicator of batch b    -> scatter scale back
    y = jnp.dot(h, pool_ref[...], preferred_element_type=jnp.float32)            # (C, 128)
    z = jnp.maximum(
        jnp.dot(wdu1_ref[...], y, preferred_element_type=jnp.float32) + bdu1_ref[...], 0.0)
    s = jax.nn.sigmoid(
        jnp.dot(wdu2_ref[...], z, preferred_element_type=jnp.float32) + bdu2_ref[...])
    scale = jnp.dot(s, bcast_ref[...], preferred_element_type=jnp.float32)       # (C, BB*L)

    out = jnp.maximum(h * scale + res, 0.0)
    o_ref[...] = out.astype(o_ref.dtype)


# ------------------------------ wrapper ------------------------------

def _full_spec(shape):
    nd = len(shape)
    return pl.BlockSpec(shape, lambda i, _nd=nd: (0,) * _nd)


def _pack_conv_weight(w):
    """(K, Cout, Cin) -> (Cout, K*Cin), tap-major column blocks (lane-dense weight layout)."""
    K, Co, Ci = w.shape
    return jnp.transpose(w, (1, 0, 2)).reshape(Co, K * Ci)


@functools.partial(jax.jit, static_argnames=("batch_block",))
def block_forward(x, params, batch_block=None):
    (w1, b1, w2, b2, w3, b3, wdu1, bdu1, wdu2, bdu2) = params
    Bsz, Cx, Lx = x.shape
    if batch_block is None:
        batch_block = Bsz        # one grid step: best for single-TC v5e / v6e
    # NOTE(v7x): pass batch_block=Bsz//2 to keep a size-2 "parallel" grid axis so both
    # TensorCores each take half the batch.
    assert Bsz % batch_block == 0
    grid = Bsz // batch_block
    BL = batch_block * Lx

    # Lane-dense stacked conv weights (Cout, K*Cin) for the im2col matmuls.
    w1b, w2b, w3b = _pack_conv_weight(w1), _pack_conv_weight(w2), _pack_conv_weight(w3)

    # Pool / broadcast selector matrices for the CALayer (constants under jit).
    seg = jnp.arange(BL, dtype=jnp.int32) // Lx                           # batch id of each lane
    colb = jnp.arange(128, dtype=jnp.int32)
    pool = (seg[:, None] == colb[None, :]).astype(jnp.float32) / Lx       # (BL, 128)
    bcast = (colb[:, None] == seg[None, :]).astype(jnp.float32)           # (128, BL)

    # Fold the batch onto the lane axis: (B, C, L) -> (C, B*L), batch-major lanes.
    x2 = jnp.transpose(x, (1, 0, 2)).reshape(Cx, Bsz * Lx)

    in_specs = [
        _full_spec(w1b.shape), _full_spec(b1.shape),
        _full_spec(w2b.shape), _full_spec(b2.shape),
        _full_spec(w3b.shape), _full_spec(b3.shape),
        _full_spec(wdu1.shape), _full_spec(bdu1.shape),
        _full_spec(wdu2.shape), _full_spec(bdu2.shape),
        _full_spec(pool.shape), _full_spec(bcast.shape),
        pl.BlockSpec((Cx, BL), lambda i: (0, i)),
    ]
    out_specs = pl.BlockSpec((Cx, BL), lambda i: (0, i))

    out2 = pl.pallas_call(
        functools.partial(block_kernel, seq_len=Lx),
        out_shape=jax.ShapeDtypeStruct((Cx, Bsz * Lx), x.dtype),
        grid_spec=pltpu.PrefetchScalarGridSpec(
            num_scalar_prefetch=0,
            grid=(grid,),
            in_specs=in_specs,
            out_specs=out_specs,
        ),
        compiler_params=pltpu.CompilerParams(
            dimension_semantics=("parallel",)),
    )(w1b, b1, w2b, b2, w3b, b3, wdu1, bdu1, wdu2, bdu2, pool, bcast, x2)

    return jnp.transpose(out2.reshape(Cx, Bsz, Lx), (1, 0, 2))


# ------------------------------ parameter setup ------------------------------

def _weight_norm(v, g):
    # PyTorch weight_norm (dim=0): w[o] = g[o] * v[o] / ||v[o]||
    norm = jnp.sqrt(jnp.sum(v * v, axis=tuple(range(1, v.ndim)), keepdims=True))
    return g.reshape((-1,) + (1,) * (v.ndim - 1)) * v / norm


def make_params(key):
    ks = jax.random.split(key, 12)
    # regular conv layers: weights stored as (K, Cout, Cin), w[k] == torch_weight[:, :, k]
    def conv_w(k, K):
        return jax.random.normal(k, (K, C, C), jnp.float32) * 0.05
    w1 = conv_w(ks[0], 7); b1 = jax.random.normal(ks[1], (C, 1), jnp.float32) * 0.05
    w2 = conv_w(ks[2], 5); b2 = jax.random.normal(ks[3], (C, 1), jnp.float32) * 0.05
    w3 = conv_w(ks[4], 3); b3 = jax.random.normal(ks[5], (C, 1), jnp.float32) * 0.05

    # CALayer 1x1 convs with weight norm
    v1 = jax.random.normal(ks[6], (C // RED, C), jnp.float32) * 0.1
    g1 = 1.0 + 0.1 * jax.random.normal(ks[7], (C // RED,), jnp.float32)
    wdu1 = _weight_norm(v1, g1)
    bdu1 = jax.random.normal(ks[8], (C // RED, 1), jnp.float32) * 0.05

    v2 = jax.random.normal(ks[9], (C, C // RED), jnp.float32) * 0.1
    g2 = 1.0 + 0.1 * jax.random.normal(ks[10], (C,), jnp.float32)
    wdu2 = _weight_norm(v2, g2)
    bdu2 = jax.random.normal(ks[11], (C, 1), jnp.float32) * 0.05

    return (w1, b1, w2, b2, w3, b3, wdu1, bdu1, wdu2, bdu2)


# ------------------------------ pure-JAX reference ------------------------------

def block_reference(x, params):
    (w1, b1, w2, b2, w3, b3, wdu1, bdu1, wdu2, bdu2) = params

    def conv(h, w, b):
        K = w.shape[0]
        P = (K - 1) // 2
        hp = jnp.pad(h, ((0, 0), (0, 0), (P, P)))
        out = jnp.zeros_like(h)
        for k in range(K):
            out = out + jnp.einsum('oi,bil->bol', w[k], hp[:, :, k:k + h.shape[-1]])
        return out + b[None, :, :]

    res = x
    h = jax.nn.relu(conv(x, w1, b1))
    h = jax.nn.relu(conv(h, w2, b2))
    h = jax.nn.relu(conv(h, w3, b3))
    y = jnp.mean(h, axis=2, keepdims=True)
    z = jax.nn.relu(jnp.einsum('oi,bil->bol', wdu1, y) + bdu1[None])
    s = jax.nn.sigmoid(jnp.einsum('oi,bil->bol', wdu2, z) + bdu2[None])
    return jax.nn.relu(h * s + res)


if __name__ == "__main__":
    key = jax.random.PRNGKey(0)
    kx, kp = jax.random.split(key)
    x = jax.random.normal(kx, (B, C, L), jnp.float32)
    params = make_params(kp)

    out = block_forward(x, params)
    out = jax.block_until_ready(out)

    ref = block_reference(x, params)
    assert out.shape == (B, C, L)
    assert jnp.allclose(out, ref, atol=1e-4, rtol=1e-4), \
        f"max abs diff {jnp.max(jnp.abs(out - ref))}"

    print("KERNEL_OK")
</pallas_src>

<mosaic_0001>
module attributes {stable_mosaic.version = 11 : i64} {
  func.func @block_kernel(%arg0: i32, %arg1: memref<64x448xf32, #tpu.memory_space<vmem>>, %arg2: memref<64x1xf32, #tpu.memory_space<vmem>>, %arg3: memref<64x320xf32, #tpu.memory_space<vmem>>, %arg4: memref<64x1xf32, #tpu.memory_space<vmem>>, %arg5: memref<64x192xf32, #tpu.memory_space<vmem>>, %arg6: memref<64x1xf32, #tpu.memory_space<vmem>>, %arg7: memref<8x64xf32, #tpu.memory_space<vmem>>, %arg8: memref<8x1xf32, #tpu.memory_space<vmem>>, %arg9: memref<64x8xf32, #tpu.memory_space<vmem>>, %arg10: memref<64x1xf32, #tpu.memory_space<vmem>>, %arg11: memref<256x128xf32, #tpu.memory_space<vmem>>, %arg12: memref<128x256xf32, #tpu.memory_space<vmem>>, %arg13: memref<64x256xf32, #tpu.memory_space<vmem>>, %arg14: memref<64x256xf32, #tpu.memory_space<vmem>>) attributes {dimension_semantics = [#tpu.dimension_semantics<parallel>], iteration_bounds = array<i64: 1>, scalar_prefetch = 0 : i64, scratch_operands = 0 : i64, tpu.core_type = #tpu.core_type<tc>, window_params = [{pipeline_mode = #tpu.pipeline_mode<synchronous>, transform_indices = @transform_0, window_bounds = array<i64: 64, 448>}, {pipeline_mode = #tpu.pipeline_mode<synchronous>, transform_indices = @transform_1, window_bounds = array<i64: 64, 1>}, {pipeline_mode = #tpu.pipeline_mode<synchronous>, transform_indices = @transform_2, window_bounds = array<i64: 64, 320>}, {pipeline_mode = #tpu.pipeline_mode<synchronous>, transform_indices = @transform_3, window_bounds = array<i64: 64, 1>}, {pipeline_mode = #tpu.pipeline_mode<synchronous>, transform_indices = @transform_4, window_bounds = array<i64: 64, 192>}, {pipeline_mode = #tpu.pipeline_mode<synchronous>, transform_indices = @transform_5, window_bounds = array<i64: 64, 1>}, {pipeline_mode = #tpu.pipeline_mode<synchronous>, transform_indices = @transform_6, window_bounds = array<i64: 8, 64>}, {pipeline_mode = #tpu.pipeline_mode<synchronous>, transform_indices = @transform_7, window_bounds = array<i64: 8, 1>}, {pipeline_mode = #tpu.pipeline_mode<synchronous>, transform_indices = @transform_8, window_bounds = array<i64: 64, 8>}, {pipeline_mode = #tpu.pipeline_mode<synchronous>, transform_indices = @transform_9, window_bounds = array<i64: 64, 1>}, {pipeline_mode = #tpu.pipeline_mode<synchronous>, transform_indices = @transform_10, window_bounds = array<i64: 256, 128>}, {pipeline_mode = #tpu.pipeline_mode<synchronous>, transform_indices = @transform_11, window_bounds = array<i64: 128, 256>}, {transform_indices = @transform_12, window_bounds = array<i64: 64, 256>}, {transform_indices = @transform_13, window_bounds = array<i64: 64, 256>}]} {
    %c0 = arith.constant 0 : index
    %c0_0 = arith.constant 0 : index
    %0 = vector.load %arg13[%c0, %c0_0] : memref<64x256xf32, #tpu.memory_space<vmem>>, vector<64x256xf32>
    %1 = tpu.iota {dimensions = array<i32: 1>} : vector<64x256xi32>
    %c127_i32 = arith.constant 127 : i32
    %2 = vector.broadcast %c127_i32 : i32 to vector<64x256xi32>
    %3 = arith.andi %1, %2 : vector<64x256xi32>
    %c-3_i32 = arith.constant -3 : i32
    %4 = vector.broadcast %c-3_i32 : i32 to vector<64x256xi32>
    %5 = arith.addi %3, %4 : vector<64x256xi32>
    %c0_i32 = arith.constant 0 : i32
    %6 = vector.broadcast %c0_i32 : i32 to vector<64x256xi32>
    %7 = arith.cmpi sge, %5, %6 : vector<64x256xi32>
    %c-3_i32_1 = arith.constant -3 : i32
    %8 = vector.broadcast %c-3_i32_1 : i32 to vector<64x256xi32>
    %9 = arith.addi %3, %8 : vector<64x256xi32>
    %c128_i32 = arith.constant 128 : i32
    %10 = vector.broadcast %c128_i32 : i32 to vector<64x256xi32>
    %11 = arith.cmpi slt, %9, %10 : vector<64x256xi32>
    %12 = arith.andi %7, %11 : vector<64x256xi1>
    %c-2_i32 = arith.constant -2 : i32
    %13 = vector.broadcast %c-2_i32 : i32 to vector<64x256xi32>
    %14 = arith.addi %3, %13 : vector<64x256xi32>
    %c0_i32_2 = arith.constant 0 : i32
    %15 = vector.broadcast %c0_i32_2 : i32 to vector<64x256xi32>
    %16 = arith.cmpi sge, %14, %15 : vector<64x256xi32>
    %c-2_i32_3 = arith.constant -2 : i32
    %17 = vector.broadcast %c-2_i32_3 : i32 to vector<64x256xi32>
    %18 = arith.addi %3, %17 : vector<64x256xi32>
    %c128_i32_4 = arith.constant 128 : i32
    %19 = vector.broadcast %c128_i32_4 : i32 to vector<64x256xi32>
    %20 = arith.cmpi slt, %18, %19 : vector<64x256xi32>
    %21 = arith.andi %16, %20 : vector<64x256xi1>
    %c-1_i32 = arith.constant -1 : i32
    %22 = vector.broadcast %c-1_i32 : i32 to vector<64x256xi32>
    %23 = arith.addi %3, %22 : vector<64x256xi32>
    %c0_i32_5 = arith.constant 0 : i32
    %24 = vector.broadcast %c0_i32_5 : i32 to vector<64x256xi32>
    %25 = arith.cmpi sge, %23, %24 : vector<64x256xi32>
    %c-1_i32_6 = arith.constant -1 : i32
    %26 = vector.broadcast %c-1_i32_6 : i32 to vector<64x256xi32>
    %27 = arith.addi %3, %26 : vector<64x256xi32>
    %c128_i32_7 = arith.constant 128 : i32
    %28 = vector.broadcast %c128_i32_7 : i32 to vector<64x256xi32>
    %29 = arith.cmpi slt, %27, %28 : vector<64x256xi32>
    %30 = arith.andi %25, %29 : vector<64x256xi1>
    %c1_i32 = arith.constant 1 : i32
    %31 = vector.broadcast %c1_i32 : i32 to vector<64x256xi32>
    %32 = arith.addi %3, %31 : vector<64x256xi32>
    %c0_i32_8 = arith.constant 0 : i32
    %33 = vector.broadcast %c0_i32_8 : i32 to vector<64x256xi32>
    %34 = arith.cmpi sge, %32, %33 : vector<64x256xi32>
    %c1_i32_9 = arith.constant 1 : i32
    %35 = vector.broadcast %c1_i32_9 : i32 to vector<64x256xi32>
    %36 = arith.addi %3, %35 : vector<64x256xi32>
    %c128_i32_10 = arith.constant 128 : i32
    %37 = vector.broadcast %c128_i32_10 : i32 to vector<64x256xi32>
    %38 = arith.cmpi slt, %36, %37 : vector<64x256xi32>
    %39 = arith.andi %34, %38 : vector<64x256xi1>
    %c2_i32 = arith.constant 2 : i32
    %40 = vector.broadcast %c2_i32 : i32 to vector<64x256xi32>
    %41 = arith.addi %3, %40 : vector<64x256xi32>
    %c0_i32_11 = arith.constant 0 : i32
    %42 = vector.broadcast %c0_i32_11 : i32 to vector<64x256xi32>
    %43 = arith.cmpi sge, %41, %42 : vector<64x256xi32>
    %c2_i32_12 = arith.constant 2 : i32
    %44 = vector.broadcast %c2_i32_12 : i32 to vector<64x256xi32>
    %45 = arith.addi %3, %44 : vector<64x256xi32>
    %c128_i32_13 = arith.constant 128 : i32
    %46 = vector.broadcast %c128_i32_13 : i32 to vector<64x256xi32>
    %47 = arith.cmpi slt, %45, %46 : vector<64x256xi32>
    %48 = arith.andi %43, %47 : vector<64x256xi1>
    %c3_i32 = arith.constant 3 : i32
    %49 = vector.broadcast %c3_i32 : i32 to vector<64x256xi32>
    %50 = arith.addi %3, %49 : vector<64x256xi32>
    %c0_i32_14 = arith.constant 0 : i32
    %51 = vector.broadcast %c0_i32_14 : i32 to vector<64x256xi32>
    %52 = arith.cmpi sge, %50, %51 : vector<64x256xi32>
    %c3_i32_15 = arith.constant 3 : i32
    %53 = vector.broadcast %c3_i32_15 : i32 to vector<64x256xi32>
    %54 = arith.addi %3, %53 : vector<64x256xi32>
    %c128_i32_16 = arith.constant 128 : i32
    %55 = vector.broadcast %c128_i32_16 : i32 to vector<64x256xi32>
    %56 = arith.cmpi slt, %54, %55 : vector<64x256xi32>
    %57 = arith.andi %52, %56 : vector<64x256xi1>
    %c3_i32_17 = arith.constant 3 : i32
    %58 = tpu.dynamic_rotate %0 by %c3_i32_17 dim 1 : vector<64x256xf32>, i32 -> vector<64x256xf32>
    %cst = arith.constant 0.000000e+00 : f32
    %59 = vector.broadcast %cst : f32 to vector<64x256xf32>
    %60 = arith.select %12, %58, %59 : vector<64x256xi1>, vector<64x256xf32>
    %c2_i32_18 = arith.constant 2 : i32
    %61 = tpu.dynamic_rotate %0 by %c2_i32_18 dim 1 : vector<64x256xf32>, i32 -> vector<64x256xf32>
    %cst_19 = arith.constant 0.000000e+00 : f32
    %62 = vector.broadcast %cst_19 : f32 to vector<64x256xf32>
    %63 = arith.select %21, %61, %62 : vector<64x256xi1>, vector<64x256xf32>
    %c1_i32_20 = arith.constant 1 : i32
    %64 = tpu.dynamic_rotate %0 by %c1_i32_20 dim 1 : vector<64x256xf32>, i32 -> vector<64x256xf32>
    %cst_21 = arith.constant 0.000000e+00 : f32
    %65 = vector.broadcast %cst_21 : f32 to vector<64x256xf32>
    %66 = arith.select %30, %64, %65 : vector<64x256xi1>, vector<64x256xf32>
    %c255_i32 = arith.constant 255 : i32
    %67 = tpu.dynamic_rotate %0 by %c255_i32 dim 1 : vector<64x256xf32>, i32 -> vector<64x256xf32>
    %cst_22 = arith.constant 0.000000e+00 : f32
    %68 = vector.broadcast %cst_22 : f32 to vector<64x256xf32>
    %69 = arith.select %39, %67, %68 : vector<64x256xi1>, vector<64x256xf32>
    %c254_i32 = arith.constant 254 : i32
    %70 = tpu.dynamic_rotate %0 by %c254_i32 dim 1 : vector<64x256xf32>, i32 -> vector<64x256xf32>
    %cst_23 = arith.constant 0.000000e+00 : f32
    %71 = vector.broadcast %cst_23 : f32 to vector<64x256xf32>
    %72 = arith.select %48, %70, %71 : vector<64x256xi1>, vector<64x256xf32>
    %c253_i32 = arith.constant 253 : i32
    %73 = tpu.dynamic_rotate %0 by %c253_i32 dim 1 : vector<64x256xf32>, i32 -> vector<64x256xf32>
    %cst_24 = arith.constant 0.000000e+00 : f32
    %74 = vector.broadcast %cst_24 : f32 to vector<64x256xf32>
    %75 = arith.select %57, %73, %74 : vector<64x256xi1>, vector<64x256xf32>
    %76 = tpu.concatenate %60, %63, %66, %0, %69, %72, %75 in 0 : vector<64x256xf32>, vector<64x256xf32>, vector<64x256xf32>, vector<64x256xf32>, vector<64x256xf32>, vector<64x256xf32>, vector<64x256xf32> -> vector<448x256xf32>
    %c0_25 = arith.constant 0 : index
    %c0_26 = arith.constant 0 : index
    %77 = vector.load %arg1[%c0_25, %c0_26] : memref<64x448xf32, #tpu.memory_space<vmem>>, vector<64x448xf32>
    %cst_27 = arith.constant dense<0.000000e+00> : vector<64x256xf32>
    %78 = tpu.matmul %77, %76, %cst_27 {dimension_numbers = #tpu.dot_dimension_numbers<[1], [0], [0], [1], [0, 0, 1, 1], [], []>} : vector<64x448xf32>, vector<448x256xf32>, vector<64x256xf32> -> vector<64x256xf32>
    %c0_28 = arith.constant 0 : index
    %c0_29 = arith.constant 0 : index
    %79 = vector.load %arg2[%c0_28, %c0_29] : memref<64x1xf32, #tpu.memory_space<vmem>>, vector<64x1xf32>
    %80 = vector.broadcast %79 : vector<64x1xf32> to vector<64x256xf32>
    %81 = arith.addf %78, %80 : vector<64x256xf32>
    %cst_30 = arith.constant 0.000000e+00 : f32
    %82 = vector.broadcast %cst_30 : f32 to vector<64x256xf32>
    %83 = arith.maximumf %81, %82 : vector<64x256xf32>
    %c2_i32_31 = arith.constant 2 : i32
    %84 = tpu.dynamic_rotate %83 by %c2_i32_31 dim 1 : vector<64x256xf32>, i32 -> vector<64x256xf32>
    %cst_32 = arith.constant 0.000000e+00 : f32
    %85 = vector.broadcast %cst_32 : f32 to vector<64x256xf32>
    %86 = arith.select %21, %84, %85 : vector<64x256xi1>, vector<64x256xf32>
    %c1_i32_33 = arith.constant 1 : i32
    %87 = tpu.dynamic_rotate %83 by %c1_i32_33 dim 1 : vector<64x256xf32>, i32 -> vector<64x256xf32>
    %cst_34 = arith.constant 0.000000e+00 : f32
    %88 = vector.broadcast %cst_34 : f32 to vector<64x256xf32>
    %89 = arith.select %30, %87, %88 : vector<64x256xi1>, vector<64x256xf32>
    %c255_i32_35 = arith.constant 255 : i32
    %90 = tpu.dynamic_rotate %83 by %c255_i32_35 dim 1 : vector<64x256xf32>, i32 -> vector<64x256xf32>
    %cst_36 = arith.constant 0.000000e+00 : f32
    %91 = vector.broadcast %cst_36 : f32 to vector<64x256xf32>
    %92 = arith.select %39, %90, %91 : vector<64x256xi1>, vector<64x256xf32>
    %c254_i32_37 = arith.constant 254 : i32
    %93 = tpu.dynamic_rotate %83 by %c254_i32_37 dim 1 : vector<64x256xf32>, i32 -> vector<64x256xf32>
    %cst_38 = arith.constant 0.000000e+00 : f32
    %94 = vector.broadcast %cst_38 : f32 to vector<64x256xf32>
    %95 = arith.select %48, %93, %94 : vector<64x256xi1>, vector<64x256xf32>
    %96 = tpu.concatenate %86, %89, %83, %92, %95 in 0 : vector<64x256xf32>, vector<64x256xf32>, vector<64x256xf32>, vector<64x256xf32>, vector<64x256xf32> -> vector<320x256xf32>
    %c0_39 = arith.constant 0 : index
    %c0_40 = arith.constant 0 : index
    %97 = vector.load %arg3[%c0_39, %c0_40] : memref<64x320xf32, #tpu.memory_space<vmem>>, vector<64x320xf32>
    %cst_41 = arith.constant dense<0.000000e+00> : vector<64x256xf32>
    %98 = tpu.matmul %97, %96, %cst_41 {dimension_numbers = #tpu.dot_dimension_numbers<[1], [0], [0], [1], [0, 0, 1, 1], [], []>} : vector<64x320xf32>, vector<320x256xf32>, vector<64x256xf32> -> vector<64x256xf32>
    %c0_42 = arith.constant 0 : index
    %c0_43 = arith.constant 0 : index
    %99 = vector.load %arg4[%c0_42, %c0_43] : memref<64x1xf32, #tpu.memory_space<vmem>>, vector<64x1xf32>
    %100 = vector.broadcast %99 : vector<64x1xf32> to vector<64x256xf32>
    %101 = arith.addf %98, %100 : vector<64x256xf32>
    %cst_44 = arith.constant 0.000000e+00 : f32
    %102 = vector.broadcast %cst_44 : f32 to vector<64x256xf32>
    %103 = arith.maximumf %101, %102 : vector<64x256xf32>
    %c1_i32_45 = arith.constant 1 : i32
    %104 = tpu.dynamic_rotate %103 by %c1_i32_45 dim 1 : vector<64x256xf32>, i32 -> vector<64x256xf32>
    %cst_46 = arith.constant 0.000000e+00 : f32
    %105 = vector.broadcast %cst_46 : f32 to vector<64x256xf32>
    %106 = arith.select %30, %104, %105 : vector<64x256xi1>, vector<64x256xf32>
    %c255_i32_47 = arith.constant 255 : i32
    %107 = tpu.dynamic_rotate %103 by %c255_i32_47 dim 1 : vector<64x256xf32>, i32 -> vector<64x256xf32>
    %cst_48 = arith.constant 0.000000e+00 : f32
    %108 = vector.broadcast %cst_48 : f32 to vector<64x256xf32>
    %109 = arith.select %39, %107, %108 : vector<64x256xi1>, vector<64x256xf32>
    %110 = tpu.concatenate %106, %103, %109 in 0 : vector<64x256xf32>, vector<64x256xf32>, vector<64x256xf32> -> vector<192x256xf32>
    %c0_49 = arith.constant 0 : index
    %c0_50 = arith.constant 0 : index
    %111 = vector.load %arg5[%c0_49, %c0_50] : memref<64x192xf32, #tpu.memory_space<vmem>>, vector<64x192xf32>
    %cst_51 = arith.constant dense<0.000000e+00> : vector<64x256xf32>
    %112 = tpu.matmul %111, %110, %cst_51 {dimension_numbers = #tpu.dot_dimension_numbers<[1], [0], [0], [1], [0, 0, 1, 1], [], []>} : vector<64x192xf32>, vector<192x256xf32>, vector<64x256xf32> -> vector<64x256xf32>
    %c0_52 = arith.constant 0 : index
    %c0_53 = arith.constant 0 : index
    %113 = vector.load %arg6[%c0_52, %c0_53] : memref<64x1xf32, #tpu.memory_space<vmem>>, vector<64x1xf32>
    %114 = vector.broadcast %113 : vector<64x1xf32> to vector<64x256xf32>
    %115 = arith.addf %112, %114 : vector<64x256xf32>
    %cst_54 = arith.constant 0.000000e+00 : f32
    %116 = vector.broadcast %cst_54 : f32 to vector<64x256xf32>
    %117 = arith.maximumf %115, %116 : vector<64x256xf32>
    %c0_55 = arith.constant 0 : index
    %c0_56 = arith.constant 0 : index
    %118 = vector.load %arg11[%c0_55, %c0_56] : memref<256x128xf32, #tpu.memory_space<vmem>>, vector<256x128xf32>
    %cst_57 = arith.constant dense<0.000000e+00> : vector<64x128xf32>
    %119 = tpu.matmul %117, %118, %cst_57 {dimension_numbers = #tpu.dot_dimension_numbers<[1], [0], [0], [1], [0, 0, 1, 1], [], []>} : vector<64x256xf32>, vector<256x128xf32>, vector<64x128xf32> -> vector<64x128xf32>
    %c0_58 = arith.constant 0 : index
    %c0_59 = arith.constant 0 : index
    %120 = vector.load %arg7[%c0_58, %c0_59] : memref<8x64xf32, #tpu.memory_space<vmem>>, vector<8x64xf32>
    %cst_60 = arith.constant dense<0.000000e+00> : vector<8x128xf32>
    %121 = tpu.matmul %120, %119, %cst_60 {dimension_numbers = #tpu.dot_dimension_numbers<[1], [0], [0], [1], [0, 0, 1, 1], [], []>} : vector<8x64xf32>, vector<64x128xf32>, vector<8x128xf32> -> vector<8x128xf32>
    %c0_61 = arith.constant 0 : index
    %c0_62 = arith.constant 0 : index
    %122 = vector.load %arg8[%c0_61, %c0_62] : memref<8x1xf32, #tpu.memory_space<vmem>>, vector<8x1xf32>
    %123 = vector.broadcast %122 : vector<8x1xf32> to vector<8x128xf32>
    %124 = arith.addf %121, %123 : vector<8x128xf32>
    %cst_63 = arith.constant 0.000000e+00 : f32
    %125 = vector.broadcast %cst_63 : f32 to vector<8x128xf32>
    %126 = arith.maximumf %124, %125 : vector<8x128xf32>
    %c0_64 = arith.constant 0 : index
    %c0_65 = arith.constant 0 : index
    %127 = vector.load %arg9[%c0_64, %c0_65] : memref<64x8xf32, #tpu.memory_space<vmem>>, vector<64x8xf32>
    %cst_66 = arith.constant dense<0.000000e+00> : vector<64x128xf32>
    %128 = tpu.matmul %127, %126, %cst_66 {dimension_numbers = #tpu.dot_dimension_numbers<[1], [0], [0], [1], [0, 0, 1, 1], [], []>} : vector<64x8xf32>, vector<8x128xf32>, vector<64x128xf32> -> vector<64x128xf32>
    %c0_67 = arith.constant 0 : index
    %c0_68 = arith.constant 0 : index
    %129 = vector.load %arg10[%c0_67, %c0_68] : memref<64x1xf32, #tpu.memory_space<vmem>>, vector<64x1xf32>
    %130 = vector.broadcast %129 : vector<64x1xf32> to vector<64x128xf32>
    %131 = arith.addf %128, %130 : vector<64x128xf32>
    %132 = arith.negf %131 : vector<64x128xf32>
    %133 = math.exp %132 : vector<64x128xf32>
    %cst_69 = arith.constant 1.000000e+00 : f32
    %134 = vector.broadcast %cst_69 : f32 to vector<64x128xf32>
    %135 = arith.addf %134, %133 : vector<64x128xf32>
    %136 = arith.divf %134, %135 : vector<64x128xf32>
    %c0_70 = arith.constant 0 : index
    %c0_71 = arith.constant 0 : index
    %137 = vector.load %arg12[%c0_70, %c0_71] : memref<128x256xf32, #tpu.memory_space<vmem>>, vector<128x256xf32>
    %cst_72 = arith.constant dense<0.000000e+00> : vector<64x256xf32>
    %138 = tpu.matmul %136, %137, %cst_72 {dimension_numbers = #tpu.dot_dimension_numbers<[1], [0], [0], [1], [0, 0, 1, 1], [], []>} : vector<64x128xf32>, vector<128x256xf32>, vector<64x256xf32> -> vector<64x256xf32>
    %139 = arith.mulf %117, %138 : vector<64x256xf32>
    %140 = arith.addf %139, %0 : vector<64x256xf32>
    %cst_73 = arith.constant 0.000000e+00 : f32
    %141 = vector.broadcast %cst_73 : f32 to vector<64x256xf32>
    %142 = arith.maximumf %140, %141 : vector<64x256xf32>
    %c0_74 = arith.constant 0 : index
    %c0_75 = arith.constant 0 : index
    %143 = vector.load %arg14[%c0_74, %c0_75] : memref<64x256xf32, #tpu.memory_space<vmem>>, vector<64x256xf32>
    tpu.vector_store %arg14[%c0_74, %c0_75], %142 {strides = array<i32>} : memref<64x256xf32, #tpu.memory_space<vmem>>, vector<64x256xf32>,
    return
  }
  func.func @transform_0(%arg0: i32) -> (i32, i32) {
    %c0_i32 = arith.constant 0 : i32
    %c0_i32_0 = arith.constant 0 : i32
    %c0_i32_1 = arith.constant 0 : i32
    return %c0_i32, %c0_i32_0 : i32, i32
  }
  func.func @transform_1(%arg0: i32) -> (i32, i32) {
    %c0_i32 = arith.constant 0 : i32
    %c0_i32_0 = arith.constant 0 : i32
    %c0_i32_1 = arith.constant 0 : i32
    return %c0_i32, %c0_i32_0 : i32, i32
  }
  func.func @transform_2(%arg0: i32) -> (i32, i32) {
    %c0_i32 = arith.constant 0 : i32
    %c0_i32_0 = arith.constant 0 : i32
    %c0_i32_1 = arith.constant 0 : i32
    return %c0_i32, %c0_i32_0 : i32, i32
  }
  func.func @transform_3(%arg0: i32) -> (i32, i32) {
    %c0_i32 = arith.constant 0 : i32
    %c0_i32_0 = arith.constant 0 : i32
    %c0_i32_1 = arith.constant 0 : i32
    return %c0_i32, %c0_i32_0 : i32, i32
  }
  func.func @transform_4(%arg0: i32) -> (i32, i32) {
    %c0_i32 = arith.constant 0 : i32
    %c0_i32_0 = arith.constant 0 : i32
    %c0_i32_1 = arith.constant 0 : i32
    return %c0_i32, %c0_i32_0 : i32, i32
  }
  func.func @transform_5(%arg0: i32) -> (i32, i32) {
    %c0_i32 = arith.constant 0 : i32
    %c0_i32_0 = arith.constant 0 : i32
    %c0_i32_1 = arith.constant 0 : i32
    return %c0_i32, %c0_i32_0 : i32, i32
  }
  func.func @transform_6(%arg0: i32) -> (i32, i32) {
    %c0_i32 = arith.constant 0 : i32
    %c0_i32_0 = arith.constant 0 : i32
    %c0_i32_1 = arith.constant 0 : i32
    return %c0_i32, %c0_i32_0 : i32, i32
  }
  func.func @transform_7(%arg0: i32) -> (i32, i32) {
    %c0_i32 = arith.constant 0 : i32
    %c0_i32_0 = arith.constant 0 : i32
    %c0_i32_1 = arith.constant 0 : i32
    return %c0_i32, %c0_i32_0 : i32, i32
  }
  func.func @transform_8(%arg0: i32) -> (i32, i32) {
    %c0_i32 = arith.constant 0 : i32
    %c0_i32_0 = arith.constant 0 : i32
    %c0_i32_1 = arith.constant 0 : i32
    return %c0_i32, %c0_i32_0 : i32, i32
  }
  func.func @transform_9(%arg0: i32) -> (i32, i32) {
    %c0_i32 = arith.constant 0 : i32
    %c0_i32_0 = arith.constant 0 : i32
    %c0_i32_1 = arith.constant 0 : i32
    return %c0_i32, %c0_i32_0 : i32, i32
  }
  func.func @transform_10(%arg0: i32) -> (i32, i32) {
    %c0_i32 = arith.constant 0 : i32
    %c0_i32_0 = arith.constant 0 : i32
    %c0_i32_1 = arith.constant 0 : i32
    return %c0_i32, %c0_i32_0 : i32, i32
  }
  func.func @transform_11(%arg0: i32) -> (i32, i32) {
    %c0_i32 = arith.constant 0 : i32
    %c0_i32_0 = arith.constant 0 : i32
    %c0_i32_1 = arith.constant 0 : i32
    return %c0_i32, %c0_i32_0 : i32, i32
  }
  func.func @transform_12(%arg0: i32) -> (i32, i32) {
    %c0_i32 = arith.constant 0 : i32
    %c0_i32_0 = arith.constant 0 : i32
    return %c0_i32, %arg0 : i32, i32
  }
  func.func @transform_13(%arg0: i32) -> (i32, i32) {
    %c0_i32 = arith.constant 0 : i32
    %c0_i32_0 = arith.constant 0 : i32
    return %c0_i32, %arg0 : i32, i32
  }
}

</mosaic_0001>

<llo_original>
// kernel: block_forward.1
$region0: #{block_forward.1}
  #allocation0 [shape = 'u32[]', space=smem, size = 0x4, offset = 0x4, fixed_abs, tag = 'smem constant byte address 0x4 - core index']
  #allocation1 [shape = 'u32[144,128]{1,0:T(1,128)}', space=vmem, size = 0x12000, scoped, tag = 'internal scratch']
  %s0 = inlined_call_operand.vmem [shape: f32[64,448], index: 0, kind: input, shape index: {}]
  %s1 = inlined_call_operand.vmem [shape: f32[64,1], index: 1, kind: input, shape index: {}]
  %s2 = inlined_call_operand.vmem [shape: f32[64,320], index: 2, kind: input, shape index: {}]
  %s3 = inlined_call_operand.vmem [shape: f32[64,1], index: 3, kind: input, shape index: {}]
  %s4 = inlined_call_operand.vmem [shape: f32[64,192], index: 4, kind: input, shape index: {}]
  %s5 = inlined_call_operand.vmem [shape: f32[64,1], index: 5, kind: input, shape index: {}]
  %s6 = inlined_call_operand.vmem [shape: f32[8,64], index: 6, kind: input, shape index: {}]
  %s7 = inlined_call_operand.vmem [shape: f32[8,1], index: 7, kind: input, shape index: {}]
  %s8 = inlined_call_operand.vmem [shape: f32[64,8], index: 8, kind: input, shape index: {}]
  %s9 = inlined_call_operand.vmem [shape: f32[64,1], index: 9, kind: input, shape index: {}]
  %s10 = inlined_call_operand.vmem [shape: f32[256,128], index: 10, kind: input, shape index: {}]
  %s11 = inlined_call_operand.vmem [shape: f32[128,256], index: 11, kind: input, shape index: {}]
  %s12 = inlined_call_operand.vmem [shape: f32[64,256], index: 12, kind: input, shape index: {}]
  %s13 = inlined_call_operand.vmem [shape: f32[64,256], index: 13, kind: output, shape index: {}]
  %s14 = sld [smem:[#allocation0]]
  $region62: #{block_forward.1} parent=0
    _
  %s16 = ssub.s32 1, %s14
  %s17 = scalar_select 0, %s16, %s14
  // Predicated region
  $region2: #{block_forward.1} parent=0 // pred_check
    _
  $region3: #{block_forward.1} parent=0 // pred_check_branch
    %19 = sbr.rel (0) target = $region5
  $region4: #{block_forward.1} parent=0 // pred_region
    _
  $region5: #{block_forward.1} parent=0 // pred_fallthru
    _
  // Predicated region
  $region6: #{block_forward.1} parent=0 // pred_check
    _
  $region7: #{block_forward.1} parent=0 // pred_check_branch
    %21 = sbr.rel (0) target = $region9
  $region8: #{block_forward.1} parent=0 // pred_region
    _
  $region9: #{block_forward.1} parent=0 // pred_fallthru
    _
  // Predicated region
  $region10: #{block_forward.1} parent=0 // pred_check
    _
  $region11: #{block_forward.1} parent=0 // pred_check_branch
    %23 = sbr.rel (0) target = $region13
  $region12: #{block_forward.1} parent=0 // pred_region
    _
  $region13: #{block_forward.1} parent=0 // pred_fallthru
    _
  // Predicated region
  $region14: #{block_forward.1} parent=0 // pred_check
    _
  $region15: #{block_forward.1} parent=0 // pred_check_branch
    %25 = sbr.rel (0) target = $region17
  $region16: #{block_forward.1} parent=0 // pred_region
    _
  $region17: #{block_forward.1} parent=0 // pred_fallthru
    _
  // Predicated region
  $region18: #{block_forward.1} parent=0 // pred_check
    _
  $region19: #{block_forward.1} parent=0 // pred_check_branch
    %27 = sbr.rel (0) target = $region21
  $region20: #{block_forward.1} parent=0 // pred_region
    _
  $region21: #{block_forward.1} parent=0 // pred_fallthru
    _
  // Predicated region
  $region22: #{block_forward.1} parent=0 // pred_check
    _
  $region23: #{block_forward.1} parent=0 // pred_check_branch
    %29 = sbr.rel (0) target = $region25
  $region24: #{block_forward.1} parent=0 // pred_region
    _
  $region25: #{block_forward.1} parent=0 // pred_fallthru
    _
  // Predicated region
  $region26: #{block_forward.1} parent=0 // pred_check
    _
  $region27: #{block_forward.1} parent=0 // pred_check_branch
    %31 = sbr.rel (0) target = $region29
  $region28: #{block_forward.1} parent=0 // pred_region
    _
  $region29: #{block_forward.1} parent=0 // pred_fallthru
    _
  // Predicated region
  $region30: #{block_forward.1} parent=0 // pred_check
    _
  $region31: #{block_forward.1} parent=0 // pred_check_branch
    %33 = sbr.rel (0) target = $region33
  $region32: #{block_forward.1} parent=0 // pred_region
    _
  $region33: #{block_forward.1} parent=0 // pred_fallthru
    _
  // Predicated region
  $region34: #{block_forward.1} parent=0 // pred_check
    _
  $region35: #{block_forward.1} parent=0 // pred_check_branch
    %35 = sbr.rel (0) target = $region37
  $region36: #{block_forward.1} parent=0 // pred_region
    _
  $region37: #{block_forward.1} parent=0 // pred_fallthru
    _
  // Predicated region
  $region38: #{block_forward.1} parent=0 // pred_check
    _
  $region39: #{block_forward.1} parent=0 // pred_check_branch
    %37 = sbr.rel (0) target = $region41
  $region40: #{block_forward.1} parent=0 // pred_region
    _
  $region41: #{block_forward.1} parent=0 // pred_fallthru
    _
  // Predicated region
  $region42: #{block_forward.1} parent=0 // pred_check
    _
  $region43: #{block_forward.1} parent=0 // pred_check_branch
    %39 = sbr.rel (0) target = $region45
  $region44: #{block_forward.1} parent=0 // pred_region
    _
  $region45: #{block_forward.1} parent=0 // pred_fallthru
    _
  // Predicated region
  $region46: #{block_forward.1} parent=0 // pred_check
    _
  $region47: #{block_forward.1} parent=0 // pred_check_branch
    %41 = sbr.rel (0) target = $region49
  $region48: #{block_forward.1} parent=0 // pred_region
    _
  $region49: #{block_forward.1} parent=0 // pred_fallthru
    _
  // Predicated region
  $region50: #{block_forward.1} parent=0 // pred_check
    _
  $region51: #{block_forward.1} parent=0 // pred_check_branch
    %43 = sbr.rel (0) target = $region53
  $region52: #{block_forward.1} parent=0 // pred_region
    _
  $region53: #{block_forward.1} parent=0 // pred_fallthru
    _
  %v44 = vld [vmem:[%s12] sm:$0xff]
  %v45 = vld [vmem:[%s12 + $0x8] sm:$0xff]
  %v46 = vld [vmem:[%s12 + $0x10] sm:$0xff]
  %v47 = vld [vmem:[%s12 + $0x18] sm:$0xff]
  %v48 = vld [vmem:[%s12 + $0x20] sm:$0xff]
  %v49 = vld [vmem:[%s12 + $0x28] sm:$0xff]
  %v50 = vld [vmem:[%s12 + $0x30] sm:$0xff]
  %v51 = vld [vmem:[%s12 + $0x38] sm:$0xff]
  %v52 = vld [vmem:[%s12 + $0x40] sm:$0xff]
  %v53 = vld [vmem:[%s12 + $0x48] sm:$0xff]
  %v54 = vld [vmem:[%s12 + $0x50] sm:$0xff]
  %v55 = vld [vmem:[%s12 + $0x58] sm:$0xff]
  %v56 = vld [vmem:[%s12 + $0x60] sm:$0xff]
  %v57 = vld [vmem:[%s12 + $0x68] sm:$0xff]
  %v58 = vld [vmem:[%s12 + $0x70] sm:$0xff]
  %v59 = vld [vmem:[%s12 + $0x78] sm:$0xff]
  %v60 = vlaneseq
  %v61 = vand.u32 %v60, 127
  %v62 = vadd.s32 %v61, 128
  %v63 = vand.u32 %v61, 127
  %v64 = vand.u32 %v62, 127
  %v65 = vadd.s32 %v63, 4294967293
  %v66 = vadd.s32 %v64, 4294967293
  %vm67 = vcmp.ge.s32.totalorder %v65, 0
  %vm68 = vcmp.ge.s32.totalorder %v66, 0
  %vm69 = vcmp.lt.s32.totalorder %v65, 128
  %vm70 = vcmp.lt.s32.totalorder %v66, 128
  %vm71 = vmand %vm67, %vm69
  %vm72 = vmand %vm68, %vm70
  %v73 = vadd.s32 %v63, 4294967294
  %v74 = vadd.s32 %v64, 4294967294
  %vm75 = vcmp.ge.s32.totalorder %v73, 0
  %vm76 = vcmp.ge.s32.totalorder %v74, 0
  %vm77 = vcmp.lt.s32.totalorder %v73, 128
  %vm78 = vcmp.lt.s32.totalorder %v74, 128
  %vm79 = vmand %vm75, %vm77
  %vm80 = vmand %vm76, %vm78
  %v81 = vadd.s32 %v63, 4294967295
  %v82 = vadd.s32 %v64, 4294967295
  %vm83 = vcmp.ge.s32.totalorder %v81, 0
  %vm84 = vcmp.ge.s32.totalorder %v82, 0
  %vm85 = vcmp.lt.s32.totalorder %v81, 128
  %vm86 = vcmp.lt.s32.totalorder %v82, 128
  %vm87 = vmand %vm83, %vm85
  %vm88 = vmand %vm84, %vm86
  %v89 = vadd.s32 %v63, 1
  %v90 = vadd.s32 %v64, 1
  %vm91 = vcmp.ge.s32.totalorder %v89, 0
  %vm92 = vcmp.ge.s32.totalorder %v90, 0
  %vm93 = vcmp.lt.s32.totalorder %v89, 128
  %vm94 = vcmp.lt.s32.totalorder %v90, 128
  %vm95 = vmand %vm91, %vm93
  %vm96 = vmand %vm92, %vm94
  %v97 = vadd.s32 %v63, 2
  %v98 = vadd.s32 %v64, 2
  %vm99 = vcmp.ge.s32.totalorder %v97, 0
  %vm100 = vcmp.ge.s32.totalorder %v98, 0
  %vm101 = vcmp.lt.s32.totalorder %v97, 128
  %vm102 = vcmp.lt.s32.totalorder %v98, 128
  %vm103 = vmand %vm99, %vm101
  %vm104 = vmand %vm100, %vm102
  %v105 = vadd.s32 %v63, 3
  %v106 = vadd.s32 %v64, 3
  %vm107 = vcmp.ge.s32.totalorder %v105, 0
  %vm108 = vcmp.ge.s32.totalorder %v106, 0
  %vm109 = vcmp.lt.s32.totalorder %v105, 128
  %vm110 = vcmp.lt.s32.totalorder %v106, 128
  %vm111 = vmand %vm107, %vm109
  %vm112 = vmand %vm108, %vm110
  %113 = vrot.lane.b32.xlu0 %v44, 3
  %v114 = vpop.permute.xlu0 %113
  %115 = vrot.lane.b32.xlu0 %v46, 3
  %v116 = vpop.permute.xlu0 %115
  %117 = vrot.lane.b32.xlu0 %v48, 3
  %v118 = vpop.permute.xlu0 %117
  %119 = vrot.lane.b32.xlu0 %v50, 3
  %v120 = vpop.permute.xlu0 %119
  %121 = vrot.lane.b32.xlu0 %v52, 3
  %v122 = vpop.permute.xlu0 %121
  %123 = vrot.lane.b32.xlu0 %v54, 3
  %v124 = vpop.permute.xlu0 %123
  %125 = vrot.lane.b32.xlu0 %v56, 3
  %v126 = vpop.permute.xlu0 %125
  %127 = vrot.lane.b32.xlu0 %v58, 3
  %v128 = vpop.permute.xlu0 %127
  %129 = vrot.lane.b32.xlu0 %v45, 3
  %v130 = vpop.permute.xlu0 %129
  %131 = vrot.lane.b32.xlu0 %v47, 3
  %v132 = vpop.permute.xlu0 %131
  %133 = vrot.lane.b32.xlu0 %v49, 3
  %v134 = vpop.permute.xlu0 %133
  %135 = vrot.lane.b32.xlu0 %v51, 3
  %v136 = vpop.permute.xlu0 %135
  %137 = vrot.lane.b32.xlu0 %v53, 3
  %v138 = vpop.permute.xlu0 %137
  %139 = vrot.lane.b32.xlu0 %v55, 3
  %v140 = vpop.permute.xlu0 %139
  %141 = vrot.lane.b32.xlu0 %v57, 3
  %v142 = vpop.permute.xlu0 %141
  %143 = vrot.lane.b32.xlu0 %v59, 3
  %v144 = vpop.permute.xlu0 %143
  %vm145 = vcmp.lt.s32.totalorder %v61, 3
  %v146 = vsel %vm145, %v114, %v130
  %v147 = vsel %vm145, %v116, %v132
  %v148 = vsel %vm145, %v118, %v134
  %v149 = vsel %vm145, %v120, %v136
  %v150 = vsel %vm145, %v122, %v138
  %v151 = vsel %vm145, %v124, %v140
  %v152 = vsel %vm145, %v126, %v142
  %v153 = vsel %vm145, %v128, %v144
  %v154 = vsel %vm145, %v130, %v114
  %v155 = vsel %vm145, %v132, %v116
  %v156 = vsel %vm145, %v134, %v118
  %v157 = vsel %vm145, %v136, %v120
  %v158 = vsel %vm145, %v138, %v122
  %v159 = vsel %vm145, %v140, %v124
  %v160 = vsel %vm145, %v142, %v126
  %v161 = vsel %vm145, %v144, %v128
  %v162 = vsel %vm71, %v154, 0.0
  %v163 = vsel %vm72, %v146, 0.0
  %v164 = vsel %vm71, %v155, 0.0
  %v165 = vsel %vm72, %v147, 0.0
  %v166 = vsel %vm71, %v156, 0.0
  %v167 = vsel %vm72, %v148, 0.0
  %v168 = vsel %vm71, %v157, 0.0
  %v169 = vsel %vm72, %v149, 0.0
  %v170 = vsel %vm71, %v158, 0.0
  %v171 = vsel %vm72, %v150, 0.0
  %v172 = vsel %vm71, %v159, 0.0
  %v173 = vsel %vm72, %v151, 0.0
  %v174 = vsel %vm71, %v160, 0.0
  %v175 = vsel %vm72, %v152, 0.0
  %v176 = vsel %vm71, %v161, 0.0
  %v177 = vsel %vm72, %v153, 0.0
  %178 = vrot.lane.b32.xlu0 %v44, 2
  %v179 = vpop.permute.xlu0 %178
  %180 = vrot.lane.b32.xlu0 %v46, 2
  %v181 = vpop.permute.xlu0 %180
  %182 = vrot.lane.b32.xlu0 %v48, 2
  %v183 = vpop.permute.xlu0 %182
  %184 = vrot.lane.b32.xlu0 %v50, 2
  %v185 = vpop.permute.xlu0 %184
  %186 = vrot.lane.b32.xlu0 %v52, 2
  %v187 = vpop.permute.xlu0 %186
  %188 = vrot.lane.b32.xlu0 %v54, 2
  %v189 = vpop.permute.xlu0 %188
  %190 = vrot.lane.b32.xlu0 %v56, 2
  %v191 = vpop.permute.xlu0 %190
  %192 = vrot.lane.b32.xlu0 %v58, 2
  %v193 = vpop.permute.xlu0 %192
  %194 = vrot.lane.b32.xlu0 %v45, 2
  %v195 = vpop.permute.xlu0 %194
  %196 = vrot.lane.b32.xlu0 %v47, 2
  %v197 = vpop.permute.xlu0 %196
  %198 = vrot.lane.b32.xlu0 %v49, 2
  %v199 = vpop.permute.xlu0 %198
  %200 = vrot.lane.b32.xlu0 %v51, 2
  %v201 = vpop.permute.xlu0 %200
  %202 = vrot.lane.b32.xlu0 %v53, 2
  %v203 = vpop.permute.xlu0 %202
  %204 = vrot.lane.b32.xlu0 %v55, 2
  %v205 = vpop.permute.xlu0 %204
  %206 = vrot.lane.b32.xlu0 %v57, 2
  %v207 = vpop.permute.xlu0 %206
  %208 = vrot.lane.b32.xlu0 %v59, 2
  %v209 = vpop.permute.xlu0 %208
  %vm210 = vcmp.lt.s32.totalorder %v61, 2
  %v211 = vsel %vm210, %v179, %v195
  %v212 = vsel %vm210, %v181, %v197
  %v213 = vsel %vm210, %v183, %v199
  %v214 = vsel %vm210, %v185, %v201
  %v215 = vsel %vm210, %v187, %v203
  %v216 = vsel %vm210, %v189, %v205
  %v217 = vsel %vm210, %v191, %v207
  %v218 = vsel %vm210, %v193, %v209
  %v219 = vsel %vm210, %v195, %v179
  %v220 = vsel %vm210, %v197, %v181
  %v221 = vsel %vm210, %v199, %v183
  %v222 = vsel %vm210, %v201, %v185
  %v223 = vsel %vm210, %v203, %v187
  %v224 = vsel %vm210, %v205, %v189
  %v225 = vsel %vm210, %v207, %v191
  %v226 = vsel %vm210, %v209, %v193
  %v227 = vsel %vm79, %v219, 0.0
  %v228 = vsel %vm80, %v211, 0.0
  %v229 = vsel %vm79, %v220, 0.0
  %v230 = vsel %vm80, %v212, 0.0
  %v231 = vsel %vm79, %v221, 0.0
  %v232 = vsel %vm80, %v213, 0.0
  %v233 = vsel %vm79, %v222, 0.0
  %v234 = vsel %vm80, %v214, 0.0
  %v235 = vsel %vm79, %v223, 0.0
  %v236 = vsel %vm80, %v215, 0.0
  %v237 = vsel %vm79, %v224, 0.0
  %v238 = vsel %vm80, %v216, 0.0
  %v239 = vsel %vm79, %v225, 0.0
  %v240 = vsel %vm80, %v217, 0.0
  %v241 = vsel %vm79, %v226, 0.0
  %v242 = vsel %vm80, %v218, 0.0
  %243 = vrot.lane.b32.xlu0 %v44, 1
  %v244 = vpop.permute.xlu0 %243
  %245 = vrot.lane.b32.xlu0 %v46, 1
  %v246 = vpop.permute.xlu0 %245
  %247 = vrot.lane.b32.xlu0 %v48, 1
  %v248 = vpop.permute.xlu0 %247
  %249 = vrot.lane.b32.xlu0 %v50, 1
  %v250 = vpop.permute.xlu0 %249
  %251 = vrot.lane.b32.xlu0 %v52, 1
  %v252 = vpop.permute.xlu0 %251
  %253 = vrot.lane.b32.xlu0 %v54, 1
  %v254 = vpop.permute.xlu0 %253
  %255 = vrot.lane.b32.xlu0 %v56, 1
  %v256 = vpop.permute.xlu0 %255
  %257 = vrot.lane.b32.xlu0 %v58, 1
  %v258 = vpop.permute.xlu0 %257
  %259 = vrot.lane.b32.xlu0 %v45, 1
  %v260 = vpop.permute.xlu0 %259
  %261 = vrot.lane.b32.xlu0 %v47, 1
  %v262 = vpop.permute.xlu0 %261
  %263 = vrot.lane.b32.xlu0 %v49, 1
  %v264 = vpop.permute.xlu0 %263
  %265 = vrot.lane.b32.xlu0 %v51, 1
  %v266 = vpop.permute.xlu0 %265
  %267 = vrot.lane.b32.xlu0 %v53, 1
  %v268 = vpop.permute.xlu0 %267
  %269 = vrot.lane.b32.xlu0 %v55, 1
  %v270 = vpop.permute.xlu0 %269
  %271 = vrot.lane.b32.xlu0 %v57, 1
  %v272 = vpop.permute.xlu0 %271
  %273 = vrot.lane.b32.xlu0 %v59, 1
  %v274 = vpop.permute.xlu0 %273
  %vm275 = vcmp.lt.s32.totalorder %v61, 1
  %v276 = vsel %vm275, %v244, %v260
  %v277 = vsel %vm275, %v246, %v262
  %v278 = vsel %vm275, %v248, %v264
  %v279 = vsel %vm275, %v250, %v266
  %v280 = vsel %vm275, %v252, %v268
  %v281 = vsel %vm275, %v254, %v270
  %v282 = vsel %vm275, %v256, %v272
  %v283 = vsel %vm275, %v258, %v274
  %v284 = vsel %vm275, %v260, %v244
  %v285 = vsel %vm275, %v262, %v246
  %v286 = vsel %vm275, %v264, %v248
  %v287 = vsel %vm275, %v266, %v250
  %v288 = vsel %vm275, %v268, %v252
  %v289 = vsel %vm275, %v270, %v254
  %v290 = vsel %vm275, %v272, %v256
  %v291 = vsel %vm275, %v274, %v258
  %v292 = vsel %vm87, %v284, 0.0
  %v293 = vsel %vm88, %v276, 0.0
  %v294 = vsel %vm87, %v285, 0.0
  %v295 = vsel %vm88, %v277, 0.0
  %v296 = vsel %vm87, %v286, 0.0
  %v297 = vsel %vm88, %v278, 0.0
  %v298 = vsel %vm87, %v287, 0.0
  %v299 = vsel %vm88, %v279, 0.0
  %v300 = vsel %vm87, %v288, 0.0
  %v301 = vsel %vm88, %v280, 0.0
  %v302 = vsel %vm87, %v289, 0.0
  %v303 = vsel %vm88, %v281, 0.0
  %v304 = vsel %vm87, %v290, 0.0
  %v305 = vsel %vm88, %v282, 0.0
  %v306 = vsel %vm87, %v291, 0.0
  %v307 = vsel %vm88, %v283, 0.0
  %308 = vrot.lane.b32.xlu0 %v44, 127
  %v309 = vpop.permute.xlu0 %308
  %310 = vrot.lane.b32.xlu0 %v46, 127
  %v311 = vpop.permute.xlu0 %310
  %312 = vrot.lane.b32.xlu0 %v48, 127
  %v313 = vpop.permute.xlu0 %312
  %314 = vrot.lane.b32.xlu0 %v50, 127
  %v315 = vpop.permute.xlu0 %314
  %316 = vrot.lane.b32.xlu0 %v52, 127
  %v317 = vpop.permute.xlu0 %316
  %318 = vrot.lane.b32.xlu0 %v54, 127
  %v319 = vpop.permute.xlu0 %318
  %320 = vrot.lane.b32.xlu0 %v56, 127
  %v321 = vpop.permute.xlu0 %320
  %322 = vrot.lane.b32.xlu0 %v58, 127
  %v323 = vpop.permute.xlu0 %322
  %324 = vrot.lane.b32.xlu0 %v45, 127
  %v325 = vpop.permute.xlu0 %324
  %326 = vrot.lane.b32.xlu0 %v47, 127
  %v327 = vpop.permute.xlu0 %326
  %328 = vrot.lane.b32.xlu0 %v49, 127
  %v329 = vpop.permute.xlu0 %328
  %330 = vrot.lane.b32.xlu0 %v51, 127
  %v331 = vpop.permute.xlu0 %330
  %332 = vrot.lane.b32.xlu0 %v53, 127
  %v333 = vpop.permute.xlu0 %332
  %334 = vrot.lane.b32.xlu0 %v55, 127
  %v335 = vpop.permute.xlu0 %334
  %336 = vrot.lane.b32.xlu0 %v57, 127
  %v337 = vpop.permute.xlu0 %336
  %338 = vrot.lane.b32.xlu0 %v59, 127
  %v339 = vpop.permute.xlu0 %338
  %vm340 = vcmp.lt.s32.totalorder %v61, 127
  %v341 = vsel %vm340, %v309, %v325
  %v342 = vsel %vm340, %v311, %v327
  %v343 = vsel %vm340, %v313, %v329
  %v344 = vsel %vm340, %v315, %v331
  %v345 = vsel %vm340, %v317, %v333
  %v346 = vsel %vm340, %v319, %v335
  %v347 = vsel %vm340, %v321, %v337
  %v348 = vsel %vm340, %v323, %v339
  %v349 = vsel %vm340, %v325, %v309
  %v350 = vsel %vm340, %v327, %v311
  %v351 = vsel %vm340, %v329, %v313
  %v352 = vsel %vm340, %v331, %v315
  %v353 = vsel %vm340, %v333, %v317
  %v354 = vsel %vm340, %v335, %v319
  %v355 = vsel %vm340, %v337, %v321
  %v356 = vsel %vm340, %v339, %v323
  %v357 = vsel %vm95, %v341, 0.0
  %v358 = vsel %vm96, %v349, 0.0
  %v359 = vsel %vm95, %v342, 0.0
  %v360 = vsel %vm96, %v350, 0.0
  %v361 = vsel %vm95, %v343, 0.0
  %v362 = vsel %vm96, %v351, 0.0
  %v363 = vsel %vm95, %v344, 0.0
  %v364 = vsel %vm96, %v352, 0.0
  %v365 = vsel %vm95, %v345, 0.0
  %v366 = vsel %vm96, %v353, 0.0
  %v367 = vsel %vm95, %v346, 0.0
  %v368 = vsel %vm96, %v354, 0.0
  %v369 = vsel %vm95, %v347, 0.0
  %v370 = vsel %vm96, %v355, 0.0
  %v371 = vsel %vm95, %v348, 0.0
  %v372 = vsel %vm96, %v356, 0.0
  %373 = vrot.lane.b32.xlu0 %v44, 126
  %v374 = vpop.permute.xlu0 %373
  %375 = vrot.lane.b32.xlu0 %v46, 126
  %v376 = vpop.permute.xlu0 %375
  %377 = vrot.lane.b32.xlu0 %v48, 126
  %v378 = vpop.permute.xlu0 %377
  %379 = vrot.lane.b32.xlu0 %v50, 126
  %v380 = vpop.permute.xlu0 %379
  %381 = vrot.lane.b32.xlu0 %v52, 126
  %v382 = vpop.permute.xlu0 %381
  %383 = vrot.lane.b32.xlu0 %v54, 126
  %v384 = vpop.permute.xlu0 %383
  %385 = vrot.lane.b32.xlu0 %v56, 126
  %v386 = vpop.permute.xlu0 %385
  %387 = vrot.lane.b32.xlu0 %v58, 126
  %v388 = vpop.permute.xlu0 %387
  %389 = vrot.lane.b32.xlu0 %v45, 126
  %v390 = vpop.permute.xlu0 %389
  %391 = vrot.lane.b32.xlu0 %v47, 126
  %v392 = vpop.permute.xlu0 %391
  %393 = vrot.lane.b32.xlu0 %v49, 126
  %v394 = vpop.permute.xlu0 %393
  %395 = vrot.lane.b32.xlu0 %v51, 126
  %v396 = vpop.permute.xlu0 %395
  %397 = vrot.lane.b32.xlu0 %v53, 126
  %v398 = vpop.permute.xlu0 %397
  %399 = vrot.lane.b32.xlu0 %v55, 126
  %v400 = vpop.permute.xlu0 %399
  %401 = vrot.lane.b32.xlu0 %v57, 126
  %v402 = vpop.permute.xlu0 %401
  %403 = vrot.lane.b32.xlu0 %v59, 126
  %v404 = vpop.permute.xlu0 %403
  %vm405 = vcmp.lt.s32.totalorder %v61, 126
  %v406 = vsel %vm405, %v374, %v390
  %v407 = vsel %vm405, %v376, %v392
  %v408 = vsel %vm405, %v378, %v394
  %v409 = vsel %vm405, %v380, %v396
  %v410 = vsel %vm405, %v382, %v398
  %v411 = vsel %vm405, %v384, %v400
  %v412 = vsel %vm405, %v386, %v402
  %v413 = vsel %vm405, %v388, %v404
  %v414 = vsel %vm405, %v390, %v374
  %v415 = vsel %vm405, %v392, %v376
  %v416 = vsel %vm405, %v394, %v378
  %v417 = vsel %vm405, %v396, %v380
  %v418 = vsel %vm405, %v398, %v382
  %v419 = vsel %vm405, %v400, %v384
  %v420 = vsel %vm405, %v402, %v386
  %v421 = vsel %vm405, %v404, %v388
  %v422 = vsel %vm103, %v406, 0.0
  %v423 = vsel %vm104, %v414, 0.0
  %v424 = vsel %vm103, %v407, 0.0
  %v425 = vsel %vm104, %v415, 0.0
  %v426 = vsel %vm103, %v408, 0.0
  %v427 = vsel %vm104, %v416, 0.0
  %v428 = vsel %vm103, %v409, 0.0
  %v429 = vsel %vm104, %v417, 0.0
  %v430 = vsel %vm103, %v410, 0.0
  %v431 = vsel %vm104, %v418, 0.0
  %v432 = vsel %vm103, %v411, 0.0
  %v433 = vsel %vm104, %v419, 0.0
  %v434 = vsel %vm103, %v412, 0.0
  %v435 = vsel %vm104, %v420, 0.0
  %v436 = vsel %vm103, %v413, 0.0
  %v437 = vsel %vm104, %v421, 0.0
  %438 = vrot.lane.b32.xlu0 %v44, 125
  %v439 = vpop.permute.xlu0 %438
  %440 = vrot.lane.b32.xlu0 %v46, 125
  %v441 = vpop.permute.xlu0 %440
  %442 = vrot.lane.b32.xlu0 %v48, 125
  %v443 = vpop.permute.xlu0 %442
  %444 = vrot.lane.b32.xlu0 %v50, 125
  %v445 = vpop.permute.xlu0 %444
  %446 = vrot.lane.b32.xlu0 %v52, 125
  %v447 = vpop.permute.xlu0 %446
  %448 = vrot.lane.b32.xlu0 %v54, 125
  %v449 = vpop.permute.xlu0 %448
  %450 = vrot.lane.b32.xlu0 %v56, 125
  %v451 = vpop.permute.xlu0 %450
  %452 = vrot.lane.b32.xlu0 %v58, 125
  %v453 = vpop.permute.xlu0 %452
  %454 = vrot.lane.b32.xlu0 %v45, 125
  %v455 = vpop.permute.xlu0 %454
  %456 = vrot.lane.b32.xlu0 %v47, 125
  %v457 = vpop.permute.xlu0 %456
  %458 = vrot.lane.b32.xlu0 %v49, 125
  %v459 = vpop.permute.xlu0 %458
  %460 = vrot.lane.b32.xlu0 %v51, 125
  %v461 = vpop.permute.xlu0 %460
  %462 = vrot.lane.b32.xlu0 %v53, 125
  %v463 = vpop.permute.xlu0 %462
  %464 = vrot.lane.b32.xlu0 %v55, 125
  %v465 = vpop.permute.xlu0 %464
  %466 = vrot.lane.b32.xlu0 %v57, 125
  %v467 = vpop.permute.xlu0 %466
  %468 = vrot.lane.b32.xlu0 %v59, 125
  %v469 = vpop.permute.xlu0 %468
  %vm470 = vcmp.lt.s32.totalorder %v61, 125
  %v471 = vsel %vm470, %v439, %v455
  %v472 = vsel %vm470, %v441, %v457
  %v473 = vsel %vm470, %v443, %v459
  %v474 = vsel %vm470, %v445, %v461
  %v475 = vsel %vm470, %v447, %v463
  %v476 = vsel %vm470, %v449, %v465
  %v477 = vsel %vm470, %v451, %v467
  %v478 = vsel %vm470, %v453, %v469
  %v479 = vsel %vm470, %v455, %v439
  %v480 = vsel %vm470, %v457, %v441
  %v481 = vsel %vm470, %v459, %v443
  %v482 = vsel %vm470, %v461, %v445
  %v483 = vsel %vm470, %v463, %v447
  %v484 = vsel %vm470, %v465, %v449
  %v485 = vsel %vm470, %v467, %v451
  %v486 = vsel %vm470, %v469, %v453
  %v487 = vsel %vm111, %v471, 0.0
  %v488 = vsel %vm112, %v479, 0.0
  %v489 = vsel %vm111, %v472, 0.0
  %v490 = vsel %vm112, %v480, 0.0
  %v491 = vsel %vm111, %v473, 0.0
  %v492 = vsel %vm112, %v481, 0.0
  %v493 = vsel %vm111, %v474, 0.0
  %v494 = vsel %vm112, %v482, 0.0
  %v495 = vsel %vm111, %v475, 0.0
  %v496 = vsel %vm112, %v483, 0.0
  %v497 = vsel %vm111, %v476, 0.0
  %v498 = vsel %vm112, %v484, 0.0
  %v499 = vsel %vm111, %v477, 0.0
  %v500 = vsel %vm112, %v485, 0.0
  %v501 = vsel %vm111, %v478, 0.0
  %v502 = vsel %vm112, %v486, 0.0
  %v503 = vld [vmem:[%s0] sm:$0xff]
  %v504 = vld [vmem:[%s0 + $0x8] sm:$0xff]
  %v505 = vld [vmem:[%s0 + $0x10] sm:$0xff]
  %v506 = vld [vmem:[%s0 + $0x18] sm:$0xff]
  %v507 = vld [vmem:[%s0 + $0x20] sm:$0xff]
  %v508 = vld [vmem:[%s0 + $0x28] sm:$0xff]
  %v509 = vld [vmem:[%s0 + $0x30] sm:$0xff]
  %v510 = vld [vmem:[%s0 + $0x38] sm:$0xff]
  %v511 = vld [vmem:[%s0 + $0x40] sm:$0xff]
  %v512 = vld [vmem:[%s0 + $0x48] sm:$0xff]
  %v513 = vld [vmem:[%s0 + $0x50] sm:$0xff]
  %v514 = vld [vmem:[%s0 + $0x58] sm:$0xff]
  %v515 = vld [vmem:[%s0 + $0x60] sm:$0xff]
  %v516 = vld [vmem:[%s0 + $0x68] sm:$0xff]
  %v517 = vld [vmem:[%s0 + $0x70] sm:$0xff]
  %v518 = vld [vmem:[%s0 + $0x78] sm:$0xff]
  %v519 = vld [vmem:[%s0 + $0x80] sm:$0xff]
  %v520 = vld [vmem:[%s0 + $0x88] sm:$0xff]
  %v521 = vld [vmem:[%s0 + $0x90] sm:$0xff]
  %v522 = vld [vmem:[%s0 + $0x98] sm:$0xff]
  %v523 = vld [vmem:[%s0 + $0xa0] sm:$0xff]
  %v524 = vld [vmem:[%s0 + $0xa8] sm:$0xff]
  %v525 = vld [vmem:[%s0 + $0xb0] sm:$0xff]
  %v526 = vld [vmem:[%s0 + $0xb8] sm:$0xff]
  %v527 = vld [vmem:[%s0 + $0xc0] sm:$0xff]
  %v528 = vld [vmem:[%s0 + $0xc8] sm:$0xff]
  %v529 = vld [vmem:[%s0 + $0xd0] sm:$0xff]
  %v530 = vld [vmem:[%s0 + $0xd8] sm:$0xff]
  %v531 = vld [vmem:[%s0 + $0xe0] sm:$0xff]
  %v532 = vld [vmem:[%s0 + $0xe8] sm:$0xff]
  %v533 = vld [vmem:[%s0 + $0xf0] sm:$0xff]
  %v534 = vld [vmem:[%s0 + $0xf8] sm:$0xff]
  %v535 = vld [vmem:[%s1] sm:$0xff]
  %v536 = vld [vmem:[%s1 + $0x8] sm:$0xff]
  %v537 = vld [vmem:[%s1 + $0x10] sm:$0xff]
  %v538 = vld [vmem:[%s1 + $0x18] sm:$0xff]
  %v539 = vld [vmem:[%s1 + $0x20] sm:$0xff]
  %v540 = vld [vmem:[%s1 + $0x28] sm:$0xff]
  %v541 = vld [vmem:[%s1 + $0x30] sm:$0xff]
  %v542 = vld [vmem:[%s1 + $0x38] sm:$0xff]
  %544 = vset.pattern.permute.xlu0 0
  %545 = vperm.xlu0 %544, %v535
  %v546 = vpop.permute.xlu0 %545
  %549 = vset.pattern.permute.xlu0 0
  %550 = vperm.xlu0 %549, %v536
  %v551 = vpop.permute.xlu0 %550
  %554 = vset.pattern.permute.xlu0 0
  %555 = vperm.xlu0 %554, %v537
  %v556 = vpop.permute.xlu0 %555
  %559 = vset.pattern.permute.xlu0 0
  %560 = vperm.xlu0 %559, %v538
  %v561 = vpop.permute.xlu0 %560
  %564 = vset.pattern.permute.xlu0 0
  %565 = vperm.xlu0 %564, %v539
  %v566 = vpop.permute.xlu0 %565
  %569 = vset.pattern.permute.xlu0 0
  %570 = vperm.xlu0 %569, %v540
  %v571 = vpop.permute.xlu0 %570
  %574 = vset.pattern.permute.xlu0 0
  %575 = vperm.xlu0 %574, %v541
  %v576 = vpop.permute.xlu0 %575
  %579 = vset.pattern.permute.xlu0 0
  %580 = vperm.xlu0 %579, %v542
  %v581 = vpop.permute.xlu0 %580
  %vm583 = vcmask 523264
  %v585 = vsel %vm583, %v506, 0
  %v588 = vsel %vm583, %v510, 0
  %v591 = vsel %vm583, %v514, 0
  %v594 = vsel %vm583, %v518, 0
  %v597 = vsel %vm583, %v522, 0
  %v600 = vsel %vm583, %v526, 0
  %v603 = vsel %vm583, %v530, 0
  %v606 = vsel %vm583, %v534, 0
  %608 = vmatprep.subr.mxu0 %v242
  %609 = vmatpush1.msra.mxu0 %v241
  %610 = vmatprep.subr.mxu0 %v240
  %611 = vmatpush1.msra.mxu0 %v239
  %612 = vmatprep.subr.mxu0 %v238
  %613 = vmatpush1.msra.mxu0 %v237
  %614 = vmatprep.subr.mxu0 %v236
  %615 = vmatpush1.msra.mxu0 %v235
  %616 = vmatprep.subr.mxu0 %v234
  %617 = vmatpush1.msra.mxu0 %v233
  %618 = vmatprep.subr.mxu0 %v232
  %619 = vmatpush1.msra.mxu0 %v231
  %620 = vmatprep.subr.mxu0 %v230
  %621 = vmatpush1.msra.mxu0 %v229
  %622 = vmatprep.subr.mxu0 %v228
  %623 = vmatpush1.msra.mxu0 %v227
  %624 = vmatprep.subr.mxu0 %v177
  %625 = vmatpush1.msra.mxu0 %v176
  %626 = vmatprep.subr.mxu0 %v175
  %627 = vmatpush1.msra.mxu0 %v174
  %628 = vmatprep.subr.mxu0 %v173
  %629 = vmatpush1.msra.mxu0 %v172
  %630 = vmatprep.subr.mxu0 %v171
  %631 = vmatpush1.msra.mxu0 %v170
  %632 = vmatprep.subr.mxu0 %v169
  %633 = vmatpush1.msra.mxu0 %v168
  %634 = vmatprep.subr.mxu0 %v167
  %635 = vmatpush1.msra.mxu0 %v166
  %636 = vmatprep.subr.mxu0 %v165
  %637 = vmatpush1.msra.mxu0 %v164
  %638 = vmatprep.subr.mxu0 %v163
  %639 = vmatpush1.msra.mxu0 %v162
  %640 = vmatprep.subr.mxu0 %v59
  %641 = vmatpush2.msra.mxu0 %v58
  %642 = vmatprep.subr.mxu0 %v57
  %643 = vmatpush2.msra.mxu0 %v56
  %644 = vmatprep.subr.mxu0 %v55
  %645 = vmatpush2.msra.mxu0 %v54
  %646 = vmatprep.subr.mxu0 %v53
  %647 = vmatpush2.msra.mxu0 %v52
  %648 = vmatprep.subr.mxu0 %v51
  %649 = vmatpush2.msra.mxu0 %v50
  %650 = vmatprep.subr.mxu0 %v49
  %651 = vmatpush2.msra.mxu0 %v48
  %652 = vmatprep.subr.mxu0 %v47
  %653 = vmatpush2.msra.mxu0 %v46
  %654 = vmatprep.subr.mxu0 %v45
  %655 = vmatpush2.msra.mxu0 %v44
  %656 = vmatprep.subr.mxu0 %v307
  %657 = vmatpush2.msra.mxu0 %v306
  %658 = vmatprep.subr.mxu0 %v305
  %659 = vmatpush2.msra.mxu0 %v304
  %660 = vmatprep.subr.mxu0 %v303
  %661 = vmatpush2.msra.mxu0 %v302
  %662 = vmatprep.subr.mxu0 %v301
  %663 = vmatpush2.msra.mxu0 %v300
  %664 = vmatprep.subr.mxu0 %v299
  %665 = vmatpush2.msra.mxu0 %v298
  %666 = vmatprep.subr.mxu0 %v297
  %667 = vmatpush2.msra.mxu0 %v296
  %668 = vmatprep.subr.mxu0 %v295
  %669 = vmatpush2.msra.mxu0 %v294
  %670 = vmatprep.subr.mxu0 %v293
  %671 = vmatpush2.msra.mxu0 %v292
  %672 = vmatprep.mubr.f32.mxu0 %v504
  %673 = vmatmul.mubr.f32.gmra.mxu0 %v503
  %v674 = vpop.f32.mrf.mxu0
  %v675 = vadd.f32 %v546, %v674
  %v676 = vpop.f32.mrf.mxu0
  %v677 = vadd.f32 %v546, %v676
  %678 = vmatprep.mubr.f32.mxu0 %v508
  %679 = vmatmul.mubr.f32.gmra.mxu0 %v507
  %v680 = vpop.f32.mrf.mxu0
  %v681 = vadd.f32 %v551, %v680
  %v682 = vpop.f32.mrf.mxu0
  %v683 = vadd.f32 %v551, %v682
  %684 = vmatprep.mubr.f32.mxu0 %v512
  %685 = vmatmul.mubr.f32.gmra.mxu0 %v511
  %v686 = vpop.f32.mrf.mxu0
  %v687 = vadd.f32 %v556, %v686
  %v688 = vpop.f32.mrf.mxu0
  %v689 = vadd.f32 %v556, %v688
  %690 = vmatprep.mubr.f32.mxu0 %v516
  %691 = vmatmul.mubr.f32.gmra.mxu0 %v515
  %v692 = vpop.f32.mrf.mxu0
  %v693 = vadd.f32 %v561, %v692
  %v694 = vpop.f32.mrf.mxu0
  %v695 = vadd.f32 %v561, %v694
  %696 = vmatprep.mubr.f32.mxu0 %v520
  %697 = vmatmul.mubr.f32.gmra.mxu0 %v519
  %v698 = vpop.f32.mrf.mxu0
  %v699 = vadd.f32 %v566, %v698
  %v700 = vpop.f32.mrf.mxu0
  %v701 = vadd.f32 %v566, %v700
  %702 = vmatprep.mubr.f32.mxu0 %v524
  %703 = vmatmul.mubr.f32.gmra.mxu0 %v523
  %v704 = vpop.f32.mrf.mxu0
  %v705 = vadd.f32 %v571, %v704
  %v706 = vpop.f32.mrf.mxu0
  %v707 = vadd.f32 %v571, %v706
  %708 = vmatprep.mubr.f32.mxu0 %v528
  %709 = vmatmul.mubr.f32.gmra.mxu0 %v527
  %v710 = vpop.f32.mrf.mxu0
  %v711 = vadd.f32 %v576, %v710
  %v712 = vpop.f32.mrf.mxu0
  %v713 = vadd.f32 %v576, %v712
  %714 = vmatprep.mubr.f32.mxu0 %v532
  %715 = vmatmul.mubr.f32.gmra.mxu0 %v531
  %v716 = vpop.f32.mrf.mxu0
  %v717 = vadd.f32 %v581, %v716
  %v718 = vpop.f32.mrf.mxu0
  %v719 = vadd.f32 %v581, %v718
  %720 = vdwg.mxu0
  %721 = vmatprep.subr.mxu0 %v437
  %722 = vmatpush1.msra.mxu0 %v436
  %723 = vmatprep.subr.mxu0 %v435
  %724 = vmatpush1.msra.mxu0 %v434
  %725 = vmatprep.subr.mxu0 %v433
  %726 = vmatpush1.msra.mxu0 %v432
  %727 = vmatprep.subr.mxu0 %v431
  %728 = vmatpush1.msra.mxu0 %v430
  %729 = vmatprep.subr.mxu0 %v429
  %730 = vmatpush1.msra.mxu0 %v428
  %731 = vmatprep.subr.mxu0 %v427
  %732 = vmatpush1.msra.mxu0 %v426
  %733 = vmatprep.subr.mxu0 %v425
  %734 = vmatpush1.msra.mxu0 %v424
  %735 = vmatprep.subr.mxu0 %v423
  %736 = vmatpush1.msra.mxu0 %v422
  %737 = vmatprep.subr.mxu0 %v372
  %738 = vmatpush1.msra.mxu0 %v371
  %739 = vmatprep.subr.mxu0 %v370
  %740 = vmatpush1.msra.mxu0 %v369
  %741 = vmatprep.subr.mxu0 %v368
  %742 = vmatpush1.msra.mxu0 %v367
  %743 = vmatprep.subr.mxu0 %v366
  %744 = vmatpush1.msra.mxu0 %v365
  %745 = vmatprep.subr.mxu0 %v364
  %746 = vmatpush1.msra.mxu0 %v363
  %747 = vmatprep.subr.mxu0 %v362
  %748 = vmatpush1.msra.mxu0 %v361
  %749 = vmatprep.subr.mxu0 %v360
  %750 = vmatpush1.msra.mxu0 %v359
  %751 = vmatprep.subr.mxu0 %v358
  %752 = vmatpush1.msra.mxu0 %v357
  %753 = vmatprep.subr.mxu0 0.0
  %754 = vmatpush2.msra.mxu0 0.0
  %755 = vmatprep.subr.mxu0 0.0
  %756 = vmatpush2.msra.mxu0 0.0
  %757 = vmatprep.subr.mxu0 0.0
  %758 = vmatpush2.msra.mxu0 0.0
  %759 = vmatprep.subr.mxu0 0.0
  %760 = vmatpush2.msra.mxu0 0.0
  %761 = vmatprep.subr.mxu0 0.0
  %762 = vmatpush2.msra.mxu0 0.0
  %763 = vmatprep.subr.mxu0 0.0
  %764 = vmatpush2.msra.mxu0 0.0
  %765 = vmatprep.subr.mxu0 0.0
  %766 = vmatpush2.msra.mxu0 0.0
  %767 = vmatprep.subr.mxu0 0.0
  %768 = vmatpush2.msra.mxu0 0.0
  %769 = vmatprep.subr.mxu0 %v502
  %770 = vmatpush2.msra.mxu0 %v501
  %771 = vmatprep.subr.mxu0 %v500
  %772 = vmatpush2.msra.mxu0 %v499
  %773 = vmatprep.subr.mxu0 %v498
  %774 = vmatpush2.msra.mxu0 %v497
  %775 = vmatprep.subr.mxu0 %v496
  %776 = vmatpush2.msra.mxu0 %v495
  %777 = vmatprep.subr.mxu0 %v494
  %778 = vmatpush2.msra.mxu0 %v493
  %779 = vmatprep.subr.mxu0 %v492
  %780 = vmatpush2.msra.mxu0 %v491
  %781 = vmatprep.subr.mxu0 %v490
  %782 = vmatpush2.msra.mxu0 %v489
  %783 = vmatprep.subr.mxu0 %v488
  %784 = vmatpush2.msra.mxu0 %v487
  %785 = vmatprep.mubr.f32.mxu0 %v585
  %786 = vmatmul.mubr.f32.gmra.mxu0 %v505
  %v787 = vpop.f32.mrf.mxu0
  %v788 = vadd.f32 %v675, %v787
  %v789 = vpop.f32.mrf.mxu0
  %v790 = vadd.f32 %v677, %v789
  %791 = vmatprep.mubr.f32.mxu0 %v588
  %792 = vmatmul.mubr.f32.gmra.mxu0 %v509
  %v793 = vpop.f32.mrf.mxu0
  %v794 = vadd.f32 %v681, %v793
  %v795 = vpop.f32.mrf.mxu0
  %v796 = vadd.f32 %v683, %v795
  %797 = vmatprep.mubr.f32.mxu0 %v591
  %798 = vmatmul.mubr.f32.gmra.mxu0 %v513
  %v799 = vpop.f32.mrf.mxu0
  %v800 = vadd.f32 %v687, %v799
  %v801 = vpop.f32.mrf.mxu0
  %v802 = vadd.f32 %v689, %v801
  %803 = vmatprep.mubr.f32.mxu0 %v594
  %804 = vmatmul.mubr.f32.gmra.mxu0 %v517
  %v805 = vpop.f32.mrf.mxu0
  %v806 = vadd.f32 %v693, %v805
  %v807 = vpop.f32.mrf.mxu0
  %v808 = vadd.f32 %v695, %v807
  %809 = vmatprep.mubr.f32.mxu0 %v597
  %810 = vmatmul.mubr.f32.gmra.mxu0 %v521
  %v811 = vpop.f32.mrf.mxu0
  %v812 = vadd.f32 %v699, %v811
  %v813 = vpop.f32.mrf.mxu0
  %v814 = vadd.f32 %v701, %v813
  %815 = vmatprep.mubr.f32.mxu0 %v600
  %816 = vmatmul.mubr.f32.gmra.mxu0 %v525
  %v817 = vpop.f32.mrf.mxu0
  %v818 = vadd.f32 %v705, %v817
  %v819 = vpop.f32.mrf.mxu0
  %v820 = vadd.f32 %v707, %v819
  %821 = vmatprep.mubr.f32.mxu0 %v603
  %822 = vmatmul.mubr.f32.gmra.mxu0 %v529
  %v823 = vpop.f32.mrf.mxu0
  %v824 = vadd.f32 %v711, %v823
  %v825 = vpop.f32.mrf.mxu0
  %v826 = vadd.f32 %v713, %v825
  %827 = vmatprep.mubr.f32.mxu0 %v606
  %828 = vmatmul.mubr.f32.gmra.mxu0 %v533
  %v829 = vpop.f32.mrf.mxu0
  %v830 = vadd.f32 %v717, %v829
  %v831 = vpop.f32.mrf.mxu0
  %v832 = vadd.f32 %v719, %v831
  %833 = vdwg.mxu0
  %v834 = vmax.f32 %v788, 0.0
  %v835 = vmax.f32 %v790, 0.0
  %v836 = vmax.f32 %v794, 0.0
  %v837 = vmax.f32 %v796, 0.0
  %v838 = vmax.f32 %v800, 0.0
  %v839 = vmax.f32 %v802, 0.0
  %v840 = vmax.f32 %v806, 0.0
  %v841 = vmax.f32 %v808, 0.0
  %v842 = vmax.f32 %v812, 0.0
  %v843 = vmax.f32 %v814, 0.0
  %v844 = vmax.f32 %v818, 0.0
  %v845 = vmax.f32 %v820, 0.0
  %v846 = vmax.f32 %v824, 0.0
  %v847 = vmax.f32 %v826, 0.0
  %v848 = vmax.f32 %v830, 0.0
  %v849 = vmax.f32 %v832, 0.0
  %850 = vrot.lane.b32.xlu0 %v834, 2
  %v851 = vpop.permute.xlu0 %850
  %852 = vrot.lane.b32.xlu0 %v836, 2
  %v853 = vpop.permute.xlu0 %852
  %854 = vrot.lane.b32.xlu0 %v838, 2
  %v855 = vpop.permute.xlu0 %854
  %856 = vrot.lane.b32.xlu0 %v840, 2
  %v857 = vpop.permute.xlu0 %856
  %858 = vrot.lane.b32.xlu0 %v842, 2
  %v859 = vpop.permute.xlu0 %858
  %860 = vrot.lane.b32.xlu0 %v844, 2
  %v861 = vpop.permute.xlu0 %860
  %862 = vrot.lane.b32.xlu0 %v846, 2
  %v863 = vpop.permute.xlu0 %862
  %864 = vrot.lane.b32.xlu0 %v848, 2
  %v865 = vpop.permute.xlu0 %864
  %866 = vrot.lane.b32.xlu0 %v835, 2
  %v867 = vpop.permute.xlu0 %866
  %868 = vrot.lane.b32.xlu0 %v837, 2
  %v869 = vpop.permute.xlu0 %868
  %870 = vrot.lane.b32.xlu0 %v839, 2
  %v871 = vpop.permute.xlu0 %870
  %872 = vrot.lane.b32.xlu0 %v841, 2
  %v873 = vpop.permute.xlu0 %872
  %874 = vrot.lane.b32.xlu0 %v843, 2
  %v875 = vpop.permute.xlu0 %874
  %876 = vrot.lane.b32.xlu0 %v845, 2
  %v877 = vpop.permute.xlu0 %876
  %878 = vrot.lane.b32.xlu0 %v847, 2
  %v879 = vpop.permute.xlu0 %878
  %880 = vrot.lane.b32.xlu0 %v849, 2
  %v881 = vpop.permute.xlu0 %880
  %v882 = vsel %vm210, %v851, %v867
  %v883 = vsel %vm210, %v853, %v869
  %v884 = vsel %vm210, %v855, %v871
  %v885 = vsel %vm210, %v857, %v873
  %v886 = vsel %vm210, %v859, %v875
  %v887 = vsel %vm210, %v861, %v877
  %v888 = vsel %vm210, %v863, %v879
  %v889 = vsel %vm210, %v865, %v881
  %v890 = vsel %vm210, %v867, %v851
  %v891 = vsel %vm210, %v869, %v853
  %v892 = vsel %vm210, %v871, %v855
  %v893 = vsel %vm210, %v873, %v857
  %v894 = vsel %vm210, %v875, %v859
  %v895 = vsel %vm210, %v877, %v861
  %v896 = vsel %vm210, %v879, %v863
  %v897 = vsel %vm210, %v881, %v865
  %v898 = vsel %vm79, %v890, 0.0
  %v899 = vsel %vm80, %v882, 0.0
  %v900 = vsel %vm79, %v891, 0.0
  %v901 = vsel %vm80, %v883, 0.0
  %v902 = vsel %vm79, %v892, 0.0
  %v903 = vsel %vm80, %v884, 0.0
  %v904 = vsel %vm79, %v893, 0.0
  %v905 = vsel %vm80, %v885, 0.0
  %v906 = vsel %vm79, %v894, 0.0
  %v907 = vsel %vm80, %v886, 0.0
  %v908 = vsel %vm79, %v895, 0.0
  %v909 = vsel %vm80, %v887, 0.0
  %v910 = vsel %vm79, %v896, 0.0
  %v911 = vsel %vm80, %v888, 0.0
  %v912 = vsel %vm79, %v897, 0.0
  %v913 = vsel %vm80, %v889, 0.0
  %914 = vrot.lane.b32.xlu0 %v834, 1
  %v915 = vpop.permute.xlu0 %914
  %916 = vrot.lane.b32.xlu0 %v836, 1
  %v917 = vpop.permute.xlu0 %916
  %918 = vrot.lane.b32.xlu0 %v838, 1
  %v919 = vpop.permute.xlu0 %918
  %920 = vrot.lane.b32.xlu0 %v840, 1
  %v921 = vpop.permute.xlu0 %920
  %922 = vrot.lane.b32.xlu0 %v842, 1
  %v923 = vpop.permute.xlu0 %922
  %924 = vrot.lane.b32.xlu0 %v844, 1
  %v925 = vpop.permute.xlu0 %924
  %926 = vrot.lane.b32.xlu0 %v846, 1
  %v927 = vpop.permute.xlu0 %926
  %928 = vrot.lane.b32.xlu0 %v848, 1
  %v929 = vpop.permute.xlu0 %928
  %930 = vrot.lane.b32.xlu0 %v835, 1
  %v931 = vpop.permute.xlu0 %930
  %932 = vrot.lane.b32.xlu0 %v837, 1
  %v933 = vpop.permute.xlu0 %932
  %934 = vrot.lane.b32.xlu0 %v839, 1
  %v935 = vpop.permute.xlu0 %934
  %936 = vrot.lane.b32.xlu0 %v841, 1
  %v937 = vpop.permute.xlu0 %936
  %938 = vrot.lane.b32.xlu0 %v843, 1
  %v939 = vpop.permute.xlu0 %938
  %940 = vrot.lane.b32.xlu0 %v845, 1
  %v941 = vpop.permute.xlu0 %940
  %942 = vrot.lane.b32.xlu0 %v847, 1
  %v943 = vpop.permute.xlu0 %942
  %944 = vrot.lane.b32.xlu0 %v849, 1
  %v945 = vpop.permute.xlu0 %944
  %v946 = vsel %vm275, %v915, %v931
  %v947 = vsel %vm275, %v917, %v933
  %v948 = vsel %vm275, %v919, %v935
  %v949 = vsel %vm275, %v921, %v937
  %v950 = vsel %vm275, %v923, %v939
  %v951 = vsel %vm275, %v925, %v941
  %v952 = vsel %vm275, %v927, %v943
  %v953 = vsel %vm275, %v929, %v945
  %v954 = vsel %vm275, %v931, %v915
  %v955 = vsel %vm275, %v933, %v917
  %v956 = vsel %vm275, %v935, %v919
  %v957 = vsel %vm275, %v937, %v921
  %v958 = vsel %vm275, %v939, %v923
  %v959 = vsel %vm275, %v941, %v925
  %v960 = vsel %vm275, %v943, %v927
  %v961 = vsel %vm275, %v945, %v929
  %v962 = vsel %vm87, %v954, 0.0
  %v963 = vsel %vm88, %v946, 0.0
  %v964 = vsel %vm87, %v955, 0.0
  %v965 = vsel %vm88, %v947, 0.0
  %v966 = vsel %vm87, %v956, 0.0
  %v967 = vsel %vm88, %v948, 0.0
  %v968 = vsel %vm87, %v957, 0.0
  %v969 = vsel %vm88, %v949, 0.0
  %v970 = vsel %vm87, %v958, 0.0
  %v971 = vsel %vm88, %v950, 0.0
  %v972 = vsel %vm87, %v959, 0.0
  %v973 = vsel %vm88, %v951, 0.0
  %v974 = vsel %vm87, %v960, 0.0
  %v975 = vsel %vm88, %v952, 0.0
  %v976 = vsel %vm87, %v961, 0.0
  %v977 = vsel %vm88, %v953, 0.0
  %978 = vrot.lane.b32.xlu0 %v834, 127
  %v979 = vpop.permute.xlu0 %978
  %980 = vrot.lane.b32.xlu0 %v836, 127
  %v981 = vpop.permute.xlu0 %980
  %982 = vrot.lane.b32.xlu0 %v838, 127
  %v983 = vpop.permute.xlu0 %982
  %984 = vrot.lane.b32.xlu0 %v840, 127
  %v985 = vpop.permute.xlu0 %984
  %986 = vrot.lane.b32.xlu0 %v842, 127
  %v987 = vpop.permute.xlu0 %986
  %988 = vrot.lane.b32.xlu0 %v844, 127
  %v989 = vpop.permute.xlu0 %988
  %990 = vrot.lane.b32.xlu0 %v846, 127
  %v991 = vpop.permute.xlu0 %990
  %992 = vrot.lane.b32.xlu0 %v848, 127
  %v993 = vpop.permute.xlu0 %992
  %994 = vrot.lane.b32.xlu0 %v835, 127
  %v995 = vpop.permute.xlu0 %994
  %996 = vrot.lane.b32.xlu0 %v837, 127
  %v997 = vpop.permute.xlu0 %996
  %998 = vrot.lane.b32.xlu0 %v839, 127
  %v999 = vpop.permute.xlu0 %998
  %1000 = vrot.lane.b32.xlu0 %v841, 127
  %v1001 = vpop.permute.xlu0 %1000
  %1002 = vrot.lane.b32.xlu0 %v843, 127
  %v1003 = vpop.permute.xlu0 %1002
  %1004 = vrot.lane.b32.xlu0 %v845, 127
  %v1005 = vpop.permute.xlu0 %1004
  %1006 = vrot.lane.b32.xlu0 %v847, 127
  %v1007 = vpop.permute.xlu0 %1006
  %1008 = vrot.lane.b32.xlu0 %v849, 127
  %v1009 = vpop.permute.xlu0 %1008
  %v1010 = vsel %vm340, %v979, %v995
  %v1011 = vsel %vm340, %v981, %v997
  %v1012 = vsel %vm340, %v983, %v999
  %v1013 = vsel %vm340, %v985, %v1001
  %v1014 = vsel %vm340, %v987, %v1003
  %v1015 = vsel %vm340, %v989, %v1005
  %v1016 = vsel %vm340, %v991, %v1007
  %v1017 = vsel %vm340, %v993, %v1009
  %v1018 = vsel %vm340, %v995, %v979
  %v1019 = vsel %vm340, %v997, %v981
  %v1020 = vsel %vm340, %v999, %v983
  %v1021 = vsel %vm340, %v1001, %v985
  %v1022 = vsel %vm340, %v1003, %v987
  %v1023 = vsel %vm340, %v1005, %v989
  %v1024 = vsel %vm340, %v1007, %v991
  %v1025 = vsel %vm340, %v1009, %v993
  %v1026 = vsel %vm95, %v1010, 0.0
  %v1027 = vsel %vm96, %v1018, 0.0
  %v1028 = vsel %vm95, %v1011, 0.0
  %v1029 = vsel %vm96, %v1019, 0.0
  %v1030 = vsel %vm95, %v1012, 0.0
  %v1031 = vsel %vm96, %v1020, 0.0
  %v1032 = vsel %vm95, %v1013, 0.0
  %v1033 = vsel %vm96, %v1021, 0.0
  %v1034 = vsel %vm95, %v1014, 0.0
  %v1035 = vsel %vm96, %v1022, 0.0
  %v1036 = vsel %vm95, %v1015, 0.0
  %v1037 = vsel %vm96, %v1023, 0.0
  %v1038 = vsel %vm95, %v1016, 0.0
  %v1039 = vsel %vm96, %v1024, 0.0
  %v1040 = vsel %vm95, %v1017, 0.0
  %v1041 = vsel %vm96, %v1025, 0.0
  %1042 = vrot.lane.b32.xlu0 %v834, 126
  %v1043 = vpop.permute.xlu0 %1042
  %1044 = vrot.lane.b32.xlu0 %v836, 126
  %v1045 = vpop.permute.xlu0 %1044
  %1046 = vrot.lane.b32.xlu0 %v838, 126
  %v1047 = vpop.permute.xlu0 %1046
  %1048 = vrot.lane.b32.xlu0 %v840, 126
  %v1049 = vpop.permute.xlu0 %1048
  %1050 = vrot.lane.b32.xlu0 %v842, 126
  %v1051 = vpop.permute.xlu0 %1050
  %1052 = vrot.lane.b32.xlu0 %v844, 126
  %v1053 = vpop.permute.xlu0 %1052
  %1054 = vrot.lane.b32.xlu0 %v846, 126
  %v1055 = vpop.permute.xlu0 %1054
  %1056 = vrot.lane.b32.xlu0 %v848, 126
  %v1057 = vpop.permute.xlu0 %1056
  %1058 = vrot.lane.b32.xlu0 %v835, 126
  %v1059 = vpop.permute.xlu0 %1058
  %1060 = vrot.lane.b32.xlu0 %v837, 126
  %v1061 = vpop.permute.xlu0 %1060
  %1062 = vrot.lane.b32.xlu0 %v839, 126
  %v1063 = vpop.permute.xlu0 %1062
  %1064 = vrot.lane.b32.xlu0 %v841, 126
  %v1065 = vpop.permute.xlu0 %1064
  %1066 = vrot.lane.b32.xlu0 %v843, 126
  %v1067 = vpop.permute.xlu0 %1066
  %1068 = vrot.lane.b32.xlu0 %v845, 126
  %v1069 = vpop.permute.xlu0 %1068
  %1070 = vrot.lane.b32.xlu0 %v847, 126
  %v1071 = vpop.permute.xlu0 %1070
  %1072 = vrot.lane.b32.xlu0 %v849, 126
  %v1073 = vpop.permute.xlu0 %1072
  %v1074 = vsel %vm405, %v1043, %v1059
  %v1075 = vsel %vm405, %v1045, %v1061
  %v1076 = vsel %vm405, %v1047, %v1063
  %v1077 = vsel %vm405, %v1049, %v1065
  %v1078 = vsel %vm405, %v1051, %v1067
  %v1079 = vsel %vm405, %v1053, %v1069
  %v1080 = vsel %vm405, %v1055, %v1071
  %v1081 = vsel %vm405, %v1057, %v1073
  %v1082 = vsel %vm405, %v1059, %v1043
  %v1083 = vsel %vm405, %v1061, %v1045
  %v1084 = vsel %vm405, %v1063, %v1047
  %v1085 = vsel %vm405, %v1065, %v1049
  %v1086 = vsel %vm405, %v1067, %v1051
  %v1087 = vsel %vm405, %v1069, %v1053
  %v1088 = vsel %vm405, %v1071, %v1055
  %v1089 = vsel %vm405, %v1073, %v1057
  %v1090 = vsel %vm103, %v1074, 0.0
  %v1091 = vsel %vm104, %v1082, 0.0
  %v1092 = vsel %vm103, %v1075, 0.0
  %v1093 = vsel %vm104, %v1083, 0.0
  %v1094 = vsel %vm103, %v1076, 0.0
  %v1095 = vsel %vm104, %v1084, 0.0
  %v1096 = vsel %vm103, %v1077, 0.0
  %v1097 = vsel %vm104, %v1085, 0.0
  %v1098 = vsel %vm103, %v1078, 0.0
  %v1099 = vsel %vm104, %v1086, 0.0
  %v1100 = vsel %vm103, %v1079, 0.0
  %v1101 = vsel %vm104, %v1087, 0.0
  %v1102 = vsel %vm103, %v1080, 0.0
  %v1103 = vsel %vm104, %v1088, 0.0
  %v1104 = vsel %vm103, %v1081, 0.0
  %v1105 = vsel %vm104, %v1089, 0.0
  %v1106 = vld [vmem:[%s2] sm:$0xff]
  %v1107 = vld [vmem:[%s2 + $0x8] sm:$0xff]
  %v1108 = vld [vmem:[%s2 + $0x10] sm:$0xff]
  %v1109 = vld [vmem:[%s2 + $0x18] sm:$0xff]
  %v1110 = vld [vmem:[%s2 + $0x20] sm:$0xff]
  %v1111 = vld [vmem:[%s2 + $0x28] sm:$0xff]
  %v1112 = vld [vmem:[%s2 + $0x30] sm:$0xff]
  %v1113 = vld [vmem:[%s2 + $0x38] sm:$0xff]
  %v1114 = vld [vmem:[%s2 + $0x40] sm:$0xff]
  %v1115 = vld [vmem:[%s2 + $0x48] sm:$0xff]
  %v1116 = vld [vmem:[%s2 + $0x50] sm:$0xff]
  %v1117 = vld [vmem:[%s2 + $0x58] sm:$0xff]
  %v1118 = vld [vmem:[%s2 + $0x60] sm:$0xff]
  %v1119 = vld [vmem:[%s2 + $0x68] sm:$0xff]
  %v1120 = vld [vmem:[%s2 + $0x70] sm:$0xff]
  %v1121 = vld [vmem:[%s2 + $0x78] sm:$0xff]
  %v1122 = vld [vmem:[%s2 + $0x80] sm:$0xff]
  %v1123 = vld [vmem:[%s2 + $0x88] sm:$0xff]
  %v1124 = vld [vmem:[%s2 + $0x90] sm:$0xff]
  %v1125 = vld [vmem:[%s2 + $0x98] sm:$0xff]
  %v1126 = vld [vmem:[%s2 + $0xa0] sm:$0xff]
  %v1127 = vld [vmem:[%s2 + $0xa8] sm:$0xff]
  %v1128 = vld [vmem:[%s2 + $0xb0] sm:$0xff]
  %v1129 = vld [vmem:[%s2 + $0xb8] sm:$0xff]
  %v1130 = vld [vmem:[%s3] sm:$0xff]
  %v1131 = vld [vmem:[%s3 + $0x8] sm:$0xff]
  %v1132 = vld [vmem:[%s3 + $0x10] sm:$0xff]
  %v1133 = vld [vmem:[%s3 + $0x18] sm:$0xff]
  %v1134 = vld [vmem:[%s3 + $0x20] sm:$0xff]
  %v1135 = vld [vmem:[%s3 + $0x28] sm:$0xff]
  %v1136 = vld [vmem:[%s3 + $0x30] sm:$0xff]
  %v1137 = vld [vmem:[%s3 + $0x38] sm:$0xff]
  %1139 = vset.pattern.permute.xlu0 0
  %1140 = vperm.xlu0 %1139, %v1130
  %v1141 = vpop.permute.xlu0 %1140
  %1144 = vset.pattern.permute.xlu0 0
  %1145 = vperm.xlu0 %1144, %v1131
  %v1146 = vpop.permute.xlu0 %1145
  %1149 = vset.pattern.permute.xlu0 0
  %1150 = vperm.xlu0 %1149, %v1132
  %v1151 = vpop.permute.xlu0 %1150
  %1154 = vset.pattern.permute.xlu0 0
  %1155 = vperm.xlu0 %1154, %v1133
  %v1156 = vpop.permute.xlu0 %1155
  %1159 = vset.pattern.permute.xlu0 0
  %1160 = vperm.xlu0 %1159, %v1134
  %v1161 = vpop.permute.xlu0 %1160
  %1164 = vset.pattern.permute.xlu0 0
  %1165 = vperm.xlu0 %1164, %v1135
  %v1166 = vpop.permute.xlu0 %1165
  %1169 = vset.pattern.permute.xlu0 0
  %1170 = vperm.xlu0 %1169, %v1136
  %v1171 = vpop.permute.xlu0 %1170
  %1174 = vset.pattern.permute.xlu0 0
  %1175 = vperm.xlu0 %1174, %v1137
  %v1176 = vpop.permute.xlu0 %1175
  %v1179 = vsel %vm583, %v1108, 0
  %v1182 = vsel %vm583, %v1111, 0
  %v1185 = vsel %vm583, %v1114, 0
  %v1188 = vsel %vm583, %v1117, 0
  %v1191 = vsel %vm583, %v1120, 0
  %v1194 = vsel %vm583, %v1123, 0
  %v1197 = vsel %vm583, %v1126, 0
  %v1200 = vsel %vm583, %v1129, 0
  %1202 = vmatprep.subr.mxu0 %v977
  %1203 = vmatpush1.msra.mxu0 %v976
  %1204 = vmatprep.subr.mxu0 %v975
  %1205 = vmatpush1.msra.mxu0 %v974
  %1206 = vmatprep.subr.mxu0 %v973
  %1207 = vmatpush1.msra.mxu0 %v972
  %1208 = vmatprep.subr.mxu0 %v971
  %1209 = vmatpush1.msra.mxu0 %v970
  %1210 = vmatprep.subr.mxu0 %v969
  %1211 = vmatpush1.msra.mxu0 %v968
  %1212 = vmatprep.subr.mxu0 %v967
  %1213 = vmatpush1.msra.mxu0 %v966
  %1214 = vmatprep.subr.mxu0 %v965
  %1215 = vmatpush1.msra.mxu0 %v964
  %1216 = vmatprep.subr.mxu0 %v963
  %1217 = vmatpush1.msra.mxu0 %v962
  %1218 = vmatprep.subr.mxu0 %v913
  %1219 = vmatpush1.msra.mxu0 %v912
  %1220 = vmatprep.subr.mxu0 %v911
  %1221 = vmatpush1.msra.mxu0 %v910
  %1222 = vmatprep.subr.mxu0 %v909
  %1223 = vmatpush1.msra.mxu0 %v908
  %1224 = vmatprep.subr.mxu0 %v907
  %1225 = vmatpush1.msra.mxu0 %v906
  %1226 = vmatprep.subr.mxu0 %v905
  %1227 = vmatpush1.msra.mxu0 %v904
  %1228 = vmatprep.subr.mxu0 %v903
  %1229 = vmatpush1.msra.mxu0 %v902
  %1230 = vmatprep.subr.mxu0 %v901
  %1231 = vmatpush1.msra.mxu0 %v900
  %1232 = vmatprep.subr.mxu0 %v899
  %1233 = vmatpush1.msra.mxu0 %v898
  %1234 = vmatprep.subr.mxu0 %v1041
  %1235 = vmatpush2.msra.mxu0 %v1040
  %1236 = vmatprep.subr.mxu0 %v1039
  %1237 = vmatpush2.msra.mxu0 %v1038
  %1238 = vmatprep.subr.mxu0 %v1037
  %1239 = vmatpush2.msra.mxu0 %v1036
  %1240 = vmatprep.subr.mxu0 %v1035
  %1241 = vmatpush2.msra.mxu0 %v1034
  %1242 = vmatprep.subr.mxu0 %v1033
  %1243 = vmatpush2.msra.mxu0 %v1032
  %1244 = vmatprep.subr.mxu0 %v1031
  %1245 = vmatpush2.msra.mxu0 %v1030
  %1246 = vmatprep.subr.mxu0 %v1029
  %1247 = vmatpush2.msra.mxu0 %v1028
  %1248 = vmatprep.subr.mxu0 %v1027
  %1249 = vmatpush2.msra.mxu0 %v1026
  %1250 = vmatprep.subr.mxu0 %v849
  %1251 = vmatpush2.msra.mxu0 %v848
  %1252 = vmatprep.subr.mxu0 %v847
  %1253 = vmatpush2.msra.mxu0 %v846
  %1254 = vmatprep.subr.mxu0 %v845
  %1255 = vmatpush2.msra.mxu0 %v844
  %1256 = vmatprep.subr.mxu0 %v843
  %1257 = vmatpush2.msra.mxu0 %v842
  %1258 = vmatprep.subr.mxu0 %v841
  %1259 = vmatpush2.msra.mxu0 %v840
  %1260 = vmatprep.subr.mxu0 %v839
  %1261 = vmatpush2.msra.mxu0 %v838
  %1262 = vmatprep.subr.mxu0 %v837
  %1263 = vmatpush2.msra.mxu0 %v836
  %1264 = vmatprep.subr.mxu0 %v835
  %1265 = vmatpush2.msra.mxu0 %v834
  %1266 = vmatprep.mubr.f32.mxu0 %v1107
  %1267 = vmatmul.mubr.f32.gmra.mxu0 %v1106
  %v1268 = vpop.f32.mrf.mxu0
  %v1269 = vadd.f32 %v1141, %v1268
  %v1270 = vpop.f32.mrf.mxu0
  %v1271 = vadd.f32 %v1141, %v1270
  %1272 = vmatprep.mubr.f32.mxu0 %v1110
  %1273 = vmatmul.mubr.f32.gmra.mxu0 %v1109
  %v1274 = vpop.f32.mrf.mxu0
  %v1275 = vadd.f32 %v1146, %v1274
  %v1276 = vpop.f32.mrf.mxu0
  %v1277 = vadd.f32 %v1146, %v1276
  %1278 = vmatprep.mubr.f32.mxu0 %v1113
  %1279 = vmatmul.mubr.f32.gmra.mxu0 %v1112
  %v1280 = vpop.f32.mrf.mxu0
  %v1281 = vadd.f32 %v1151, %v1280
  %v1282 = vpop.f32.mrf.mxu0
  %v1283 = vadd.f32 %v1151, %v1282
  %1284 = vmatprep.mubr.f32.mxu0 %v1116
  %1285 = vmatmul.mubr.f32.gmra.mxu0 %v1115
  %v1286 = vpop.f32.mrf.mxu0
  %v1287 = vadd.f32 %v1156, %v1286
  %v1288 = vpop.f32.mrf.mxu0
  %v1289 = vadd.f32 %v1156, %v1288
  %1290 = vmatprep.mubr.f32.mxu0 %v1119
  %1291 = vmatmul.mubr.f32.gmra.mxu0 %v1118
  %v1292 = vpop.f32.mrf.mxu0
  %v1293 = vadd.f32 %v1161, %v1292
  %v1294 = vpop.f32.mrf.mxu0
  %v1295 = vadd.f32 %v1161, %v1294
  %1296 = vmatprep.mubr.f32.mxu0 %v1122
  %1297 = vmatmul.mubr.f32.gmra.mxu0 %v1121
  %v1298 = vpop.f32.mrf.mxu0
  %v1299 = vadd.f32 %v1166, %v1298
  %v1300 = vpop.f32.mrf.mxu0
  %v1301 = vadd.f32 %v1166, %v1300
  %1302 = vmatprep.mubr.f32.mxu0 %v1125
  %1303 = vmatmul.mubr.f32.gmra.mxu0 %v1124
  %v1304 = vpop.f32.mrf.mxu0
  %v1305 = vadd.f32 %v1171, %v1304
  %v1306 = vpop.f32.mrf.mxu0
  %v1307 = vadd.f32 %v1171, %v1306
  %1308 = vmatprep.mubr.f32.mxu0 %v1128
  %1309 = vmatmul.mubr.f32.gmra.mxu0 %v1127
  %v1310 = vpop.f32.mrf.mxu0
  %v1311 = vadd.f32 %v1176, %v1310
  %v1312 = vpop.f32.mrf.mxu0
  %v1313 = vadd.f32 %v1176, %v1312
  %1314 = vdwg.mxu0
  %1315 = vmatprep.subr.mxu0 0.0
  %1316 = vmatpush1.msra.mxu0 0.0
  %1317 = vmatprep.subr.mxu0 0.0
  %1318 = vmatpush1.msra.mxu0 0.0
  %1319 = vmatprep.subr.mxu0 0.0
  %1320 = vmatpush1.msra.mxu0 0.0
  %1321 = vmatprep.subr.mxu0 0.0
  %1322 = vmatpush1.msra.mxu0 0.0
  %1323 = vmatprep.subr.mxu0 0.0
  %1324 = vmatpush1.msra.mxu0 0.0
  %1325 = vmatprep.subr.mxu0 0.0
  %1326 = vmatpush1.msra.mxu0 0.0
  %1327 = vmatprep.subr.mxu0 0.0
  %1328 = vmatpush1.msra.mxu0 0.0
  %1329 = vmatprep.subr.mxu0 0.0
  %1330 = vmatpush1.msra.mxu0 0.0
  %1331 = vmatprep.subr.mxu0 %v1105
  %1332 = vmatpush1.msra.mxu0 %v1104
  %1333 = vmatprep.subr.mxu0 %v1103
  %1334 = vmatpush1.msra.mxu0 %v1102
  %1335 = vmatprep.subr.mxu0 %v1101
  %1336 = vmatpush1.msra.mxu0 %v1100
  %1337 = vmatprep.subr.mxu0 %v1099
  %1338 = vmatpush1.msra.mxu0 %v1098
  %1339 = vmatprep.subr.mxu0 %v1097
  %1340 = vmatpush1.msra.mxu0 %v1096
  %1341 = vmatprep.subr.mxu0 %v1095
  %1342 = vmatpush1.msra.mxu0 %v1094
  %1343 = vmatprep.subr.mxu0 %v1093
  %1344 = vmatpush1.msra.mxu0 %v1092
  %1345 = vmatprep.subr.mxu0 %v1091
  %1346 = vmatpush1.msra.mxu0 %v1090
  %1347 = vmatprep.subr.mxu0 0.0
  %1348 = vmatpush2.msra.mxu0 0.0
  %1349 = vmatprep.subr.mxu0 0.0
  %1350 = vmatpush2.msra.mxu0 0.0
  %1351 = vmatprep.subr.mxu0 0.0
  %1352 = vmatpush2.msra.mxu0 0.0
  %1353 = vmatprep.subr.mxu0 0.0
  %1354 = vmatpush2.msra.mxu0 0.0
  %1355 = vmatprep.subr.mxu0 0.0
  %1356 = vmatpush2.msra.mxu0 0.0
  %1357 = vmatprep.subr.mxu0 0.0
  %1358 = vmatpush2.msra.mxu0 0.0
  %1359 = vmatprep.subr.mxu0 0.0
  %1360 = vmatpush2.msra.mxu0 0.0
  %1361 = vmatprep.subr.mxu0 0.0
  %1362 = vmatpush2.msra.mxu0 0.0
  %1363 = vmatprep.subr.mxu0 0.0
  %1364 = vmatpush2.msra.mxu0 0.0
  %1365 = vmatprep.subr.mxu0 0.0
  %1366 = vmatpush2.msra.mxu0 0.0
  %1367 = vmatprep.subr.mxu0 0.0
  %1368 = vmatpush2.msra.mxu0 0.0
  %1369 = vmatprep.subr.mxu0 0.0
  %1370 = vmatpush2.msra.mxu0 0.0
  %1371 = vmatprep.subr.mxu0 0.0
  %1372 = vmatpush2.msra.mxu0 0.0
  %1373 = vmatprep.subr.mxu0 0.0
  %1374 = vmatpush2.msra.mxu0 0.0
  %1375 = vmatprep.subr.mxu0 0.0
  %1376 = vmatpush2.msra.mxu0 0.0
  %1377 = vmatprep.subr.mxu0 0.0
  %1378 = vmatpush2.msra.mxu0 0.0
  %1379 = vmatprep.mubr.f32.mxu0 0.0
  %1380 = vmatmul.mubr.f32.gmra.mxu0 %v1179
  %v1381 = vpop.f32.mrf.mxu0
  %v1382 = vadd.f32 %v1269, %v1381
  %v1383 = vpop.f32.mrf.mxu0
  %v1384 = vadd.f32 %v1271, %v1383
  %1385 = vmatprep.mubr.f32.mxu0 0.0
  %1386 = vmatmul.mubr.f32.gmra.mxu0 %v1182
  %v1387 = vpop.f32.mrf.mxu0
  %v1388 = vadd.f32 %v1275, %v1387
  %v1389 = vpop.f32.mrf.mxu0
  %v1390 = vadd.f32 %v1277, %v1389
  %1391 = vmatprep.mubr.f32.mxu0 0.0
  %1392 = vmatmul.mubr.f32.gmra.mxu0 %v1185
  %v1393 = vpop.f32.mrf.mxu0
  %v1394 = vadd.f32 %v1281, %v1393
  %v1395 = vpop.f32.mrf.mxu0
  %v1396 = vadd.f32 %v1283, %v1395
  %1397 = vmatprep.mubr.f32.mxu0 0.0
  %1398 = vmatmul.mubr.f32.gmra.mxu0 %v1188
  %v1399 = vpop.f32.mrf.mxu0
  %v1400 = vadd.f32 %v1287, %v1399
  %v1401 = vpop.f32.mrf.mxu0
  %v1402 = vadd.f32 %v1289, %v1401
  %1403 = vmatprep.mubr.f32.mxu0 0.0
  %1404 = vmatmul.mubr.f32.gmra.mxu0 %v1191
  %v1405 = vpop.f32.mrf.mxu0
  %v1406 = vadd.f32 %v1293, %v1405
  %v1407 = vpop.f32.mrf.mxu0
  %v1408 = vadd.f32 %v1295, %v1407
  %1409 = vmatprep.mubr.f32.mxu0 0.0
  %1410 = vmatmul.mubr.f32.gmra.mxu0 %v1194
  %v1411 = vpop.f32.mrf.mxu0
  %v1412 = vadd.f32 %v1299, %v1411
  %v1413 = vpop.f32.mrf.mxu0
  %v1414 = vadd.f32 %v1301, %v1413
  %1415 = vmatprep.mubr.f32.mxu0 0.0
  %1416 = vmatmul.mubr.f32.gmra.mxu0 %v1197
  %v1417 = vpop.f32.mrf.mxu0
  %v1418 = vadd.f32 %v1305, %v1417
  %v1419 = vpop.f32.mrf.mxu0
  %v1420 = vadd.f32 %v1307, %v1419
  %1421 = vmatprep.mubr.f32.mxu0 0.0
  %1422 = vmatmul.mubr.f32.gmra.mxu0 %v1200
  %v1423 = vpop.f32.mrf.mxu0
  %v1424 = vadd.f32 %v1311, %v1423
  %v1425 = vpop.f32.mrf.mxu0
  %v1426 = vadd.f32 %v1313, %v1425
  %1427 = vdwg.mxu0
  %v1428 = vmax.f32 %v1382, 0.0
  %v1429 = vmax.f32 %v1384, 0.0
  %v1430 = vmax.f32 %v1388, 0.0
  %v1431 = vmax.f32 %v1390, 0.0
  %v1432 = vmax.f32 %v1394, 0.0
  %v1433 = vmax.f32 %v1396, 0.0
  %v1434 = vmax.f32 %v1400, 0.0
  %v1435 = vmax.f32 %v1402, 0.0
  %v1436 = vmax.f32 %v1406, 0.0
  %v1437 = vmax.f32 %v1408, 0.0
  %v1438 = vmax.f32 %v1412, 0.0
  %v1439 = vmax.f32 %v1414, 0.0
  %v1440 = vmax.f32 %v1418, 0.0
  %v1441 = vmax.f32 %v1420, 0.0
  %v1442 = vmax.f32 %v1424, 0.0
  %v1443 = vmax.f32 %v1426, 0.0
  %1444 = vrot.lane.b32.xlu0 %v1428, 1
  %v1445 = vpop.permute.xlu0 %1444
  %1446 = vrot.lane.b32.xlu0 %v1430, 1
  %v1447 = vpop.permute.xlu0 %1446
  %1448 = vrot.lane.b32.xlu0 %v1432, 1
  %v1449 = vpop.permute.xlu0 %1448
  %1450 = vrot.lane.b32.xlu0 %v1434, 1
  %v1451 = vpop.permute.xlu0 %1450
  %1452 = vrot.lane.b32.xlu0 %v1436, 1
  %v1453 = vpop.permute.xlu0 %1452
  %1454 = vrot.lane.b32.xlu0 %v1438, 1
  %v1455 = vpop.permute.xlu0 %1454
  %1456 = vrot.lane.b32.xlu0 %v1440, 1
  %v1457 = vpop.permute.xlu0 %1456
  %1458 = vrot.lane.b32.xlu0 %v1442, 1
  %v1459 = vpop.permute.xlu0 %1458
  %1460 = vrot.lane.b32.xlu0 %v1429, 1
  %v1461 = vpop.permute.xlu0 %1460
  %1462 = vrot.lane.b32.xlu0 %v1431, 1
  %v1463 = vpop.permute.xlu0 %1462
  %1464 = vrot.lane.b32.xlu0 %v1433, 1
  %v1465 = vpop.permute.xlu0 %1464
  %1466 = vrot.lane.b32.xlu0 %v1435, 1
  %v1467 = vpop.permute.xlu0 %1466
  %1468 = vrot.lane.b32.xlu0 %v1437, 1
  %v1469 = vpop.permute.xlu0 %1468
  %1470 = vrot.lane.b32.xlu0 %v1439, 1
  %v1471 = vpop.permute.xlu0 %1470
  %1472 = vrot.lane.b32.xlu0 %v1441, 1
  %v1473 = vpop.permute.xlu0 %1472
  %1474 = vrot.lane.b32.xlu0 %v1443, 1
  %v1475 = vpop.permute.xlu0 %1474
  %v1476 = vsel %vm275, %v1445, %v1461
  %v1477 = vsel %vm275, %v1447, %v1463
  %v1478 = vsel %vm275, %v1449, %v1465
  %v1479 = vsel %vm275, %v1451, %v1467
  %v1480 = vsel %vm275, %v1453, %v1469
  %v1481 = vsel %vm275, %v1455, %v1471
  %v1482 = vsel %vm275, %v1457, %v1473
  %v1483 = vsel %vm275, %v1459, %v1475
  %v1484 = vsel %vm275, %v1461, %v1445
  %v1485 = vsel %vm275, %v1463, %v1447
  %v1486 = vsel %vm275, %v1465, %v1449
  %v1487 = vsel %vm275, %v1467, %v1451
  %v1488 = vsel %vm275, %v1469, %v1453
  %v1489 = vsel %vm275, %v1471, %v1455
  %v1490 = vsel %vm275, %v1473, %v1457
  %v1491 = vsel %vm275, %v1475, %v1459
  %v1492 = vsel %vm87, %v1484, 0.0
  %v1493 = vsel %vm88, %v1476, 0.0
  %v1494 = vsel %vm87, %v1485, 0.0
  %v1495 = vsel %vm88, %v1477, 0.0
  %v1496 = vsel %vm87, %v1486, 0.0
  %v1497 = vsel %vm88, %v1478, 0.0
  %v1498 = vsel %vm87, %v1487, 0.0
  %v1499 = vsel %vm88, %v1479, 0.0
  %v1500 = vsel %vm87, %v1488, 0.0
  %v1501 = vsel %vm88, %v1480, 0.0
  %v1502 = vsel %vm87, %v1489, 0.0
  %v1503 = vsel %vm88, %v1481, 0.0
  %v1504 = vsel %vm87, %v1490, 0.0
  %v1505 = vsel %vm88, %v1482, 0.0
  %v1506 = vsel %vm87, %v1491, 0.0
  %v1507 = vsel %vm88, %v1483, 0.0
  %1508 = vrot.lane.b32.xlu0 %v1428, 127
  %v1509 = vpop.permute.xlu0 %1508
  %1510 = vrot.lane.b32.xlu0 %v1430, 127
  %v1511 = vpop.permute.xlu0 %1510
  %1512 = vrot.lane.b32.xlu0 %v1432, 127
  %v1513 = vpop.permute.xlu0 %1512
  %1514 = vrot.lane.b32.xlu0 %v1434, 127
  %v1515 = vpop.permute.xlu0 %1514
  %1516 = vrot.lane.b32.xlu0 %v1436, 127
  %v1517 = vpop.permute.xlu0 %1516
  %1518 = vrot.lane.b32.xlu0 %v1438, 127
  %v1519 = vpop.permute.xlu0 %1518
  %1520 = vrot.lane.b32.xlu0 %v1440, 127
  %v1521 = vpop.permute.xlu0 %1520
  %1522 = vrot.lane.b32.xlu0 %v1442, 127
  %v1523 = vpop.permute.xlu0 %1522
  %1524 = vrot.lane.b32.xlu0 %v1429, 127
  %v1525 = vpop.permute.xlu0 %1524
  %1526 = vrot.lane.b32.xlu0 %v1431, 127
  %v1527 = vpop.permute.xlu0 %1526
  %1528 = vrot.lane.b32.xlu0 %v1433, 127
  %v1529 = vpop.permute.xlu0 %1528
  %1530 = vrot.lane.b32.xlu0 %v1435, 127
  %v1531 = vpop.permute.xlu0 %1530
  %1532 = vrot.lane.b32.xlu0 %v1437, 127
  %v1533 = vpop.permute.xlu0 %1532
  %1534 = vrot.lane.b32.xlu0 %v1439, 127
  %v1535 = vpop.permute.xlu0 %1534
  %1536 = vrot.lane.b32.xlu0 %v1441, 127
  %v1537 = vpop.permute.xlu0 %1536
  %1538 = vrot.lane.b32.xlu0 %v1443, 127
  %v1539 = vpop.permute.xlu0 %1538
  %v1540 = vsel %vm340, %v1509, %v1525
  %v1541 = vsel %vm340, %v1511, %v1527
  %v1542 = vsel %vm340, %v1513, %v1529
  %v1543 = vsel %vm340, %v1515, %v1531
  %v1544 = vsel %vm340, %v1517, %v1533
  %v1545 = vsel %vm340, %v1519, %v1535
  %v1546 = vsel %vm340, %v1521, %v1537
  %v1547 = vsel %vm340, %v1523, %v1539
  %v1548 = vsel %vm340, %v1525, %v1509
  %v1549 = vsel %vm340, %v1527, %v1511
  %v1550 = vsel %vm340, %v1529, %v1513
  %v1551 = vsel %vm340, %v1531, %v1515
  %v1552 = vsel %vm340, %v1533, %v1517
  %v1553 = vsel %vm340, %v1535, %v1519
  %v1554 = vsel %vm340, %v1537, %v1521
  %v1555 = vsel %vm340, %v1539, %v1523
  %v1556 = vsel %vm95, %v1540, 0.0
  %v1557 = vsel %vm96, %v1548, 0.0
  %v1558 = vsel %vm95, %v1541, 0.0
  %v1559 = vsel %vm96, %v1549, 0.0
  %v1560 = vsel %vm95, %v1542, 0.0
  %v1561 = vsel %vm96, %v1550, 0.0
  %v1562 = vsel %vm95, %v1543, 0.0
  %v1563 = vsel %vm96, %v1551, 0.0
  %v1564 = vsel %vm95, %v1544, 0.0
  %v1565 = vsel %vm96, %v1552, 0.0
  %v1566 = vsel %vm95, %v1545, 0.0
  %v1567 = vsel %vm96, %v1553, 0.0
  %v1568 = vsel %vm95, %v1546, 0.0
  %v1569 = vsel %vm96, %v1554, 0.0
  %v1570 = vsel %vm95, %v1547, 0.0
  %v1571 = vsel %vm96, %v1555, 0.0
  %v1572 = vld [vmem:[%s4] sm:$0xff]
  %v1573 = vld [vmem:[%s4 + $0x8] sm:$0xff]
  %v1574 = vld [vmem:[%s4 + $0x10] sm:$0xff]
  %v1575 = vld [vmem:[%s4 + $0x18] sm:$0xff]
  %v1576 = vld [vmem:[%s4 + $0x20] sm:$0xff]
  %v1577 = vld [vmem:[%s4 + $0x28] sm:$0xff]
  %v1578 = vld [vmem:[%s4 + $0x30] sm:$0xff]
  %v1579 = vld [vmem:[%s4 + $0x38] sm:$0xff]
  %v1580 = vld [vmem:[%s4 + $0x40] sm:$0xff]
  %v1581 = vld [vmem:[%s4 + $0x48] sm:$0xff]
  %v1582 = vld [vmem:[%s4 + $0x50] sm:$0xff]
  %v1583 = vld [vmem:[%s4 + $0x58] sm:$0xff]
  %v1584 = vld [vmem:[%s4 + $0x60] sm:$0xff]
  %v1585 = vld [vmem:[%s4 + $0x68] sm:$0xff]
  %v1586 = vld [vmem:[%s4 + $0x70] sm:$0xff]
  %v1587 = vld [vmem:[%s4 + $0x78] sm:$0xff]
  %v1588 = vld [vmem:[%s5] sm:$0xff]
  %v1589 = vld [vmem:[%s5 + $0x8] sm:$0xff]
  %v1590 = vld [vmem:[%s5 + $0x10] sm:$0xff]
  %v1591 = vld [vmem:[%s5 + $0x18] sm:$0xff]
  %v1592 = vld [vmem:[%s5 + $0x20] sm:$0xff]
  %v1593 = vld [vmem:[%s5 + $0x28] sm:$0xff]
  %v1594 = vld [vmem:[%s5 + $0x30] sm:$0xff]
  %v1595 = vld [vmem:[%s5 + $0x38] sm:$0xff]
  %1597 = vset.pattern.permute.xlu0 0
  %1598 = vperm.xlu0 %1597, %v1588
  %v1599 = vpop.permute.xlu0 %1598
  %1602 = vset.pattern.permute.xlu0 0
  %1603 = vperm.xlu0 %1602, %v1589
  %v1604 = vpop.permute.xlu0 %1603
  %1607 = vset.pattern.permute.xlu0 0
  %1608 = vperm.xlu0 %1607, %v1590
  %v1609 = vpop.permute.xlu0 %1608
  %1612 = vset.pattern.permute.xlu0 0
  %1613 = vperm.xlu0 %1612, %v1591
  %v1614 = vpop.permute.xlu0 %1613
  %1617 = vset.pattern.permute.xlu0 0
  %1618 = vperm.xlu0 %1617, %v1592
  %v1619 = vpop.permute.xlu0 %1618
  %1622 = vset.pattern.permute.xlu0 0
  %1623 = vperm.xlu0 %1622, %v1593
  %v1624 = vpop.permute.xlu0 %1623
  %1627 = vset.pattern.permute.xlu0 0
  %1628 = vperm.xlu0 %1627, %v1594
  %v1629 = vpop.permute.xlu0 %1628
  %1632 = vset.pattern.permute.xlu0 0
  %1633 = vperm.xlu0 %1632, %v1595
  %v1634 = vpop.permute.xlu0 %1633
  %v1637 = vsel %vm583, %v1573, 0
  %v1640 = vsel %vm583, %v1575, 0
  %v1643 = vsel %vm583, %v1577, 0
  %v1646 = vsel %vm583, %v1579, 0
  %v1649 = vsel %vm583, %v1581, 0
  %v1652 = vsel %vm583, %v1583, 0
  %v1655 = vsel %vm583, %v1585, 0
  %v1658 = vsel %vm583, %v1587, 0
  %1660 = vmatprep.subr.mxu0 %v1443
  %1661 = vmatpush1.msra.mxu0 %v1442
  %1662 = vmatprep.subr.mxu0 %v1441
  %1663 = vmatpush1.msra.mxu0 %v1440
  %1664 = vmatprep.subr.mxu0 %v1439
  %1665 = vmatpush1.msra.mxu0 %v1438
  %1666 = vmatprep.subr.mxu0 %v1437
  %1667 = vmatpush1.msra.mxu0 %v1436
  %1668 = vmatprep.subr.mxu0 %v1435
  %1669 = vmatpush1.msra.mxu0 %v1434
  %1670 = vmatprep.subr.mxu0 %v1433
  %1671 = vmatpush1.msra.mxu0 %v1432
  %1672 = vmatprep.subr.mxu0 %v1431
  %1673 = vmatpush1.msra.mxu0 %v1430
  %1674 = vmatprep.subr.mxu0 %v1429
  %1675 = vmatpush1.msra.mxu0 %v1428
  %1676 = vmatprep.subr.mxu0 %v1507
  %1677 = vmatpush1.msra.mxu0 %v1506
  %1678 = vmatprep.subr.mxu0 %v1505
  %1679 = vmatpush1.msra.mxu0 %v1504
  %1680 = vmatprep.subr.mxu0 %v1503
  %1681 = vmatpush1.msra.mxu0 %v1502
  %1682 = vmatprep.subr.mxu0 %v1501
  %1683 = vmatpush1.msra.mxu0 %v1500
  %1684 = vmatprep.subr.mxu0 %v1499
  %1685 = vmatpush1.msra.mxu0 %v1498
  %1686 = vmatprep.subr.mxu0 %v1497
  %1687 = vmatpush1.msra.mxu0 %v1496
  %1688 = vmatprep.subr.mxu0 %v1495
  %1689 = vmatpush1.msra.mxu0 %v1494
  %1690 = vmatprep.subr.mxu0 %v1493
  %1691 = vmatpush1.msra.mxu0 %v1492
  %1692 = vmatprep.subr.mxu0 0.0
  %1693 = vmatpush2.msra.mxu0 0.0
  %1694 = vmatprep.subr.mxu0 0.0
  %1695 = vmatpush2.msra.mxu0 0.0
  %1696 = vmatprep.subr.mxu0 0.0
  %1697 = vmatpush2.msra.mxu0 0.0
  %1698 = vmatprep.subr.mxu0 0.0
  %1699 = vmatpush2.msra.mxu0 0.0
  %1700 = vmatprep.subr.mxu0 0.0
  %1701 = vmatpush2.msra.mxu0 0.0
  %1702 = vmatprep.subr.mxu0 0.0
  %1703 = vmatpush2.msra.mxu0 0.0
  %1704 = vmatprep.subr.mxu0 0.0
  %1705 = vmatpush2.msra.mxu0 0.0
  %1706 = vmatprep.subr.mxu0 0.0
  %1707 = vmatpush2.msra.mxu0 0.0
  %1708 = vmatprep.subr.mxu0 %v1571
  %1709 = vmatpush2.msra.mxu0 %v1570
  %1710 = vmatprep.subr.mxu0 %v1569
  %1711 = vmatpush2.msra.mxu0 %v1568
  %1712 = vmatprep.subr.mxu0 %v1567
  %1713 = vmatpush2.msra.mxu0 %v1566
  %1714 = vmatprep.subr.mxu0 %v1565
  %1715 = vmatpush2.msra.mxu0 %v1564
  %1716 = vmatprep.subr.mxu0 %v1563
  %1717 = vmatpush2.msra.mxu0 %v1562
  %1718 = vmatprep.subr.mxu0 %v1561
  %1719 = vmatpush2.msra.mxu0 %v1560
  %1720 = vmatprep.subr.mxu0 %v1559
  %1721 = vmatpush2.msra.mxu0 %v1558
  %1722 = vmatprep.subr.mxu0 %v1557
  %1723 = vmatpush2.msra.mxu0 %v1556
  %1724 = vmatprep.mubr.f32.mxu0 %v1637
  %1725 = vmatmul.mubr.f32.gmra.mxu0 %v1572
  %v1726 = vpop.f32.mrf.mxu0
  %v1727 = vadd.f32 %v1599, %v1726
  %v1728 = vpop.f32.mrf.mxu0
  %v1729 = vadd.f32 %v1599, %v1728
  %1730 = vmatprep.mubr.f32.mxu0 %v1640
  %1731 = vmatmul.mubr.f32.gmra.mxu0 %v1574
  %v1732 = vpop.f32.mrf.mxu0
  %v1733 = vadd.f32 %v1604, %v1732
  %v1734 = vpop.f32.mrf.mxu0
  %v1735 = vadd.f32 %v1604, %v1734
  %1736 = vmatprep.mubr.f32.mxu0 %v1643
  %1737 = vmatmul.mubr.f32.gmra.mxu0 %v1576
  %v1738 = vpop.f32.mrf.mxu0
  %v1739 = vadd.f32 %v1609, %v1738
  %v1740 = vpop.f32.mrf.mxu0
  %v1741 = vadd.f32 %v1609, %v1740
  %1742 = vmatprep.mubr.f32.mxu0 %v1646
  %1743 = vmatmul.mubr.f32.gmra.mxu0 %v1578
  %v1744 = vpop.f32.mrf.mxu0
  %v1745 = vadd.f32 %v1614, %v1744
  %v1746 = vpop.f32.mrf.mxu0
  %v1747 = vadd.f32 %v1614, %v1746
  %1748 = vmatprep.mubr.f32.mxu0 %v1649
  %1749 = vmatmul.mubr.f32.gmra.mxu0 %v1580
  %v1750 = vpop.f32.mrf.mxu0
  %v1751 = vadd.f32 %v1619, %v1750
  %v1752 = vpop.f32.mrf.mxu0
  %v1753 = vadd.f32 %v1619, %v1752
  %1754 = vmatprep.mubr.f32.mxu0 %v1652
  %1755 = vmatmul.mubr.f32.gmra.mxu0 %v1582
  %v1756 = vpop.f32.mrf.mxu0
  %v1757 = vadd.f32 %v1624, %v1756
  %v1758 = vpop.f32.mrf.mxu0
  %v1759 = vadd.f32 %v1624, %v1758
  %1760 = vmatprep.mubr.f32.mxu0 %v1655
  %1761 = vmatmul.mubr.f32.gmra.mxu0 %v1584
  %v1762 = vpop.f32.mrf.mxu0
  %v1763 = vadd.f32 %v1629, %v1762
  %v1764 = vpop.f32.mrf.mxu0
  %v1765 = vadd.f32 %v1629, %v1764
  %1766 = vmatprep.mubr.f32.mxu0 %v1658
  %1767 = vmatmul.mubr.f32.gmra.mxu0 %v1586
  %v1768 = vpop.f32.mrf.mxu0
  %v1769 = vadd.f32 %v1634, %v1768
  %v1770 = vpop.f32.mrf.mxu0
  %v1771 = vadd.f32 %v1634, %v1770
  %1772 = vdwg.mxu0
  %v1773 = vmax.f32 %v1727, 0.0
  %v1774 = vmax.f32 %v1729, 0.0
  %v1775 = vmax.f32 %v1733, 0.0
  %v1776 = vmax.f32 %v1735, 0.0
  %v1777 = vmax.f32 %v1739, 0.0
  %v1778 = vmax.f32 %v1741, 0.0
  %v1779 = vmax.f32 %v1745, 0.0
  %v1780 = vmax.f32 %v1747, 0.0
  %v1781 = vmax.f32 %v1751, 0.0
  %v1782 = vmax.f32 %v1753, 0.0
  %v1783 = vmax.f32 %v1757, 0.0
  %v1784 = vmax.f32 %v1759, 0.0
  %v1785 = vmax.f32 %v1763, 0.0
  %v1786 = vmax.f32 %v1765, 0.0
  %v1787 = vmax.f32 %v1769, 0.0
  %v1788 = vmax.f32 %v1771, 0.0
  %v1789 = vld [vmem:[%s10] sm:$0xff]
  %v1790 = vld [vmem:[%s10 + $0x8] sm:$0xff]
  %v1791 = vld [vmem:[%s10 + $0x10] sm:$0xff]
  %v1792 = vld [vmem:[%s10 + $0x18] sm:$0xff]
  %v1793 = vld [vmem:[%s10 + $0x20] sm:$0xff]
  %v1794 = vld [vmem:[%s10 + $0x28] sm:$0xff]
  %v1795 = vld [vmem:[%s10 + $0x30] sm:$0xff]
  %v1796 = vld [vmem:[%s10 + $0x38] sm:$0xff]
  %v1797 = vld [vmem:[%s10 + $0x40] sm:$0xff]
  %v1798 = vld [vmem:[%s10 + $0x48] sm:$0xff]
  %v1799 = vld [vmem:[%s10 + $0x50] sm:$0xff]
  %v1800 = vld [vmem:[%s10 + $0x58] sm:$0xff]
  %v1801 = vld [vmem:[%s10 + $0x60] sm:$0xff]
  %v1802 = vld [vmem:[%s10 + $0x68] sm:$0xff]
  %v1803 = vld [vmem:[%s10 + $0x70] sm:$0xff]
  %v1804 = vld [vmem:[%s10 + $0x78] sm:$0xff]
  %v1805 = vld [vmem:[%s10 + $0x80] sm:$0xff]
  %v1806 = vld [vmem:[%s10 + $0x88] sm:$0xff]
  %v1807 = vld [vmem:[%s10 + $0x90] sm:$0xff]
  %v1808 = vld [vmem:[%s10 + $0x98] sm:$0xff]
  %v1809 = vld [vmem:[%s10 + $0xa0] sm:$0xff]
  %v1810 = vld [vmem:[%s10 + $0xa8] sm:$0xff]
  %v1811 = vld [vmem:[%s10 + $0xb0] sm:$0xff]
  %v1812 = vld [vmem:[%s10 + $0xb8] sm:$0xff]
  %v1813 = vld [vmem:[%s10 + $0xc0] sm:$0xff]
  %v1814 = vld [vmem:[%s10 + $0xc8] sm:$0xff]
  %v1815 = vld [vmem:[%s10 + $0xd0] sm:$0xff]
  %v1816 = vld [vmem:[%s10 + $0xd8] sm:$0xff]
  %v1817 = vld [vmem:[%s10 + $0xe0] sm:$0xff]
  %v1818 = vld [vmem:[%s10 + $0xe8] sm:$0xff]
  %v1819 = vld [vmem:[%s10 + $0xf0] sm:$0xff]
  %v1820 = vld [vmem:[%s10 + $0xf8] sm:$0xff]
  %1821 = vmatprep.subr.mxu0 0.0
  %1822 = vmatpush1.msra.mxu0 %v1804
  %1823 = vmatprep.subr.mxu0 0.0
  %1824 = vmatpush1.msra.mxu0 %v1803
  %1825 = vmatprep.subr.mxu0 0.0
  %1826 = vmatpush1.msra.mxu0 %v1802
  %1827 = vmatprep.subr.mxu0 0.0
  %1828 = vmatpush1.msra.mxu0 %v1801
  %1829 = vmatprep.subr.mxu0 0.0
  %1830 = vmatpush1.msra.mxu0 %v1800
  %1831 = vmatprep.subr.mxu0 0.0
  %1832 = vmatpush1.msra.mxu0 %v1799
  %1833 = vmatprep.subr.mxu0 0.0
  %1834 = vmatpush1.msra.mxu0 %v1798
  %1835 = vmatprep.subr.mxu0 0.0
  %1836 = vmatpush1.msra.mxu0 %v1797
  %1837 = vmatprep.subr.mxu0 0.0
  %1838 = vmatpush1.msra.mxu0 %v1796
  %1839 = vmatprep.subr.mxu0 0.0
  %1840 = vmatpush1.msra.mxu0 %v1795
  %1841 = vmatprep.subr.mxu0 0.0
  %1842 = vmatpush1.msra.mxu0 %v1794
  %1843 = vmatprep.subr.mxu0 0.0
  %1844 = vmatpush1.msra.mxu0 %v1793
  %1845 = vmatprep.subr.mxu0 0.0
  %1846 = vmatpush1.msra.mxu0 %v1792
  %1847 = vmatprep.subr.mxu0 0.0
  %1848 = vmatpush1.msra.mxu0 %v1791
  %1849 = vmatprep.subr.mxu0 0.0
  %1850 = vmatpush1.msra.mxu0 %v1790
  %1851 = vmatprep.subr.mxu0 0.0
  %1852 = vmatpush1.msra.mxu0 %v1789
  %1853 = vmatprep.subr.mxu0 0.0
  %1854 = vmatpush2.msra.mxu0 %v1820
  %1855 = vmatprep.subr.mxu0 0.0
  %1856 = vmatpush2.msra.mxu0 %v1819
  %1857 = vmatprep.subr.mxu0 0.0
  %1858 = vmatpush2.msra.mxu0 %v1818
  %1859 = vmatprep.subr.mxu0 0.0
  %1860 = vmatpush2.msra.mxu0 %v1817
  %1861 = vmatprep.subr.mxu0 0.0
  %1862 = vmatpush2.msra.mxu0 %v1816
  %1863 = vmatprep.subr.mxu0 0.0
  %1864 = vmatpush2.msra.mxu0 %v1815
  %1865 = vmatprep.subr.mxu0 0.0
  %1866 = vmatpush2.msra.mxu0 %v1814
  %1867 = vmatprep.subr.mxu0 0.0
  %1868 = vmatpush2.msra.mxu0 %v1813
  %1869 = vmatprep.subr.mxu0 0.0
  %1870 = vmatpush2.msra.mxu0 %v1812
  %1871 = vmatprep.subr.mxu0 0.0
  %1872 = vmatpush2.msra.mxu0 %v1811
  %1873 = vmatprep.subr.mxu0 0.0
  %1874 = vmatpush2.msra.mxu0 %v1810
  %1875 = vmatprep.subr.mxu0 0.0
  %1876 = vmatpush2.msra.mxu0 %v1809
  %1877 = vmatprep.subr.mxu0 0.0
  %1878 = vmatpush2.msra.mxu0 %v1808
  %1879 = vmatprep.subr.mxu0 0.0
  %1880 = vmatpush2.msra.mxu0 %v1807
  %1881 = vmatprep.subr.mxu0 0.0
  %1882 = vmatpush2.msra.mxu0 %v1806
  %1883 = vmatprep.subr.mxu0 0.0
  %1884 = vmatpush2.msra.mxu0 %v1805
  %1885 = vmatprep.mubr.f32.mxu0 %v1774
  %1886 = vmatmul.mubr.f32.gmra.mxu0 %v1773
  %v1887 = vpop.f32.mrf.mxu0
  %v1888 = vadd.f32 0.0, %v1887
  %v1889 = vpop.f32.mrf.mxu0
  %1890 = vmatprep.mubr.f32.mxu0 %v1776
  %1891 = vmatmul.mubr.f32.gmra.mxu0 %v1775
  %v1892 = vpop.f32.mrf.mxu0
  %v1893 = vadd.f32 0.0, %v1892
  %v1894 = vpop.f32.mrf.mxu0
  %1895 = vmatprep.mubr.f32.mxu0 %v1778
  %1896 = vmatmul.mubr.f32.gmra.mxu0 %v1777
  %v1897 = vpop.f32.mrf.mxu0
  %v1898 = vadd.f32 0.0, %v1897
  %v1899 = vpop.f32.mrf.mxu0
  %1900 = vmatprep.mubr.f32.mxu0 %v1780
  %1901 = vmatmul.mubr.f32.gmra.mxu0 %v1779
  %v1902 = vpop.f32.mrf.mxu0
  %v1903 = vadd.f32 0.0, %v1902
  %v1904 = vpop.f32.mrf.mxu0
  %1905 = vmatprep.mubr.f32.mxu0 %v1782
  %1906 = vmatmul.mubr.f32.gmra.mxu0 %v1781
  %v1907 = vpop.f32.mrf.mxu0
  %v1908 = vadd.f32 0.0, %v1907
  %v1909 = vpop.f32.mrf.mxu0
  %1910 = vmatprep.mubr.f32.mxu0 %v1784
  %1911 = vmatmul.mubr.f32.gmra.mxu0 %v1783
  %v1912 = vpop.f32.mrf.mxu0
  %v1913 = vadd.f32 0.0, %v1912
  %v1914 = vpop.f32.mrf.mxu0
  %1915 = vmatprep.mubr.f32.mxu0 %v1786
  %1916 = vmatmul.mubr.f32.gmra.mxu0 %v1785
  %v1917 = vpop.f32.mrf.mxu0
  %v1918 = vadd.f32 0.0, %v1917
  %v1919 = vpop.f32.mrf.mxu0
  %1920 = vmatprep.mubr.f32.mxu0 %v1788
  %1921 = vmatmul.mubr.f32.gmra.mxu0 %v1787
  %v1922 = vpop.f32.mrf.mxu0
  %v1923 = vadd.f32 0.0, %v1922
  %v1924 = vpop.f32.mrf.mxu0
  %1925 = vdwg.mxu0
  %v1926 = vld [vmem:[%s6] sm:$0xff]
  %v1927 = vld [vmem:[%s7] sm:$0xff]
  %1929 = vset.pattern.permute.xlu0 0
  %1930 = vperm.xlu0 %1929, %v1927
  %v1931 = vpop.permute.xlu0 %1930
  %v1934 = vsel %vm583, %v1926, 0
  %1936 = vmatprep.subr.mxu0 0.0
  %1937 = vmatpush1.msra.mxu0 0.0
  %1938 = vmatprep.subr.mxu0 0.0
  %1939 = vmatpush1.msra.mxu0 0.0
  %1940 = vmatprep.subr.mxu0 0.0
  %1941 = vmatpush1.msra.mxu0 0.0
  %1942 = vmatprep.subr.mxu0 0.0
  %1943 = vmatpush1.msra.mxu0 0.0
  %1944 = vmatprep.subr.mxu0 0.0
  %1945 = vmatpush1.msra.mxu0 0.0
  %1946 = vmatprep.subr.mxu0 0.0
  %1947 = vmatpush1.msra.mxu0 0.0
  %1948 = vmatprep.subr.mxu0 0.0
  %1949 = vmatpush1.msra.mxu0 0.0
  %1950 = vmatprep.subr.mxu0 0.0
  %1951 = vmatpush1.msra.mxu0 0.0
  %1952 = vmatprep.subr.mxu0 0.0
  %1953 = vmatpush1.msra.mxu0 %v1923
  %1954 = vmatprep.subr.mxu0 0.0
  %1955 = vmatpush1.msra.mxu0 %v1918
  %1956 = vmatprep.subr.mxu0 0.0
  %1957 = vmatpush1.msra.mxu0 %v1913
  %1958 = vmatprep.subr.mxu0 0.0
  %1959 = vmatpush1.msra.mxu0 %v1908
  %1960 = vmatprep.subr.mxu0 0.0
  %1961 = vmatpush1.msra.mxu0 %v1903
  %1962 = vmatprep.subr.mxu0 0.0
  %1963 = vmatpush1.msra.mxu0 %v1898
  %1964 = vmatprep.subr.mxu0 0.0
  %1965 = vmatpush1.msra.mxu0 %v1893
  %1966 = vmatprep.subr.mxu0 0.0
  %1967 = vmatpush1.msra.mxu0 %v1888
  %1968 = vmatprep.subr.mxu0 0.0
  %1969 = vmatpush2.msra.mxu0 0.0
  %1970 = vmatprep.subr.mxu0 0.0
  %1971 = vmatpush2.msra.mxu0 0.0
  %1972 = vmatprep.subr.mxu0 0.0
  %1973 = vmatpush2.msra.mxu0 0.0
  %1974 = vmatprep.subr.mxu0 0.0
  %1975 = vmatpush2.msra.mxu0 0.0
  %1976 = vmatprep.subr.mxu0 0.0
  %1977 = vmatpush2.msra.mxu0 0.0
  %1978 = vmatprep.subr.mxu0 0.0
  %1979 = vmatpush2.msra.mxu0 0.0
  %1980 = vmatprep.subr.mxu0 0.0
  %1981 = vmatpush2.msra.mxu0 0.0
  %1982 = vmatprep.subr.mxu0 0.0
  %1983 = vmatpush2.msra.mxu0 0.0
  %1984 = vmatprep.subr.mxu0 0.0
  %1985 = vmatpush2.msra.mxu0 0.0
  %1986 = vmatprep.subr.mxu0 0.0
  %1987 = vmatpush2.msra.mxu0 0.0
  %1988 = vmatprep.subr.mxu0 0.0
  %1989 = vmatpush2.msra.mxu0 0.0
  %1990 = vmatprep.subr.mxu0 0.0
  %1991 = vmatpush2.msra.mxu0 0.0
  %1992 = vmatprep.subr.mxu0 0.0
  %1993 = vmatpush2.msra.mxu0 0.0
  %1994 = vmatprep.subr.mxu0 0.0
  %1995 = vmatpush2.msra.mxu0 0.0
  %1996 = vmatprep.subr.mxu0 0.0
  %1997 = vmatpush2.msra.mxu0 0.0
  %1998 = vmatprep.subr.mxu0 0.0
  %1999 = vmatpush2.msra.mxu0 0.0
  %2000 = vmatprep.mubr.f32.mxu0 0.0
  %2001 = vmatmul.mubr.f32.gmra.mxu0 %v1934
  %v2002 = vpop.f32.mrf.mxu0
  %v2003 = vadd.f32 %v1931, %v2002
  %v2004 = vpop.f32.mrf.mxu0
  %2005 = vdwg.mxu0
  %v2006 = vmax.f32 %v2003, 0.0
  %v2007 = vld [vmem:[%s8] sm:$0xff]
  %v2008 = vld [vmem:[%s8 + $0x8] sm:$0xff]
  %v2009 = vld [vmem:[%s8 + $0x10] sm:$0xff]
  %v2010 = vld [vmem:[%s8 + $0x18] sm:$0xff]
  %v2011 = vld [vmem:[%s8 + $0x20] sm:$0xff]
  %v2012 = vld [vmem:[%s8 + $0x28] sm:$0xff]
  %v2013 = vld [vmem:[%s8 + $0x30] sm:$0xff]
  %v2014 = vld [vmem:[%s8 + $0x38] sm:$0xff]
  %v2015 = vld [vmem:[%s9] sm:$0xff]
  %v2016 = vld [vmem:[%s9 + $0x8] sm:$0xff]
  %v2017 = vld [vmem:[%s9 + $0x10] sm:$0xff]
  %v2018 = vld [vmem:[%s9 + $0x18] sm:$0xff]
  %v2019 = vld [vmem:[%s9 + $0x20] sm:$0xff]
  %v2020 = vld [vmem:[%s9 + $0x28] sm:$0xff]
  %v2021 = vld [vmem:[%s9 + $0x30] sm:$0xff]
  %v2022 = vld [vmem:[%s9 + $0x38] sm:$0xff]
  %2024 = vset.pattern.permute.xlu0 0
  %2025 = vperm.xlu0 %2024, %v2015
  %v2026 = vpop.permute.xlu0 %2025
  %2029 = vset.pattern.permute.xlu0 0
  %2030 = vperm.xlu0 %2029, %v2016
  %v2031 = vpop.permute.xlu0 %2030
  %2034 = vset.pattern.permute.xlu0 0
  %2035 = vperm.xlu0 %2034, %v2017
  %v2036 = vpop.permute.xlu0 %2035
  %2039 = vset.pattern.permute.xlu0 0
  %2040 = vperm.xlu0 %2039, %v2018
  %v2041 = vpop.permute.xlu0 %2040
  %2044 = vset.pattern.permute.xlu0 0
  %2045 = vperm.xlu0 %2044, %v2019
  %v2046 = vpop.permute.xlu0 %2045
  %2049 = vset.pattern.permute.xlu0 0
  %2050 = vperm.xlu0 %2049, %v2020
  %v2051 = vpop.permute.xlu0 %2050
  %2054 = vset.pattern.permute.xlu0 0
  %2055 = vperm.xlu0 %2054, %v2021
  %v2056 = vpop.permute.xlu0 %2055
  %2059 = vset.pattern.permute.xlu0 0
  %2060 = vperm.xlu0 %2059, %v2022
  %v2061 = vpop.permute.xlu0 %2060
  %vm2063 = vcmask 64512
  %v2065 = vsel %vm2063, %v2007, 0
  %v2068 = vsel %vm2063, %v2008, 0
  %v2071 = vsel %vm2063, %v2009, 0
  %v2074 = vsel %vm2063, %v2010, 0
  %v2077 = vsel %vm2063, %v2011, 0
  %v2080 = vsel %vm2063, %v2012, 0
  %v2083 = vsel %vm2063, %v2013, 0
  %v2086 = vsel %vm2063, %v2014, 0
  %2088 = vmatprep.subr.mxu0 0.0
  %2089 = vmatpush1.msra.mxu0 0.0
  %2090 = vmatprep.subr.mxu0 0.0
  %2091 = vmatpush1.msra.mxu0 0.0
  %2092 = vmatprep.subr.mxu0 0.0
  %2093 = vmatpush1.msra.mxu0 0.0
  %2094 = vmatprep.subr.mxu0 0.0
  %2095 = vmatpush1.msra.mxu0 0.0
  %2096 = vmatprep.subr.mxu0 0.0
  %2097 = vmatpush1.msra.mxu0 0.0
  %2098 = vmatprep.subr.mxu0 0.0
  %2099 = vmatpush1.msra.mxu0 0.0
  %2100 = vmatprep.subr.mxu0 0.0
  %2101 = vmatpush1.msra.mxu0 0.0
  %2102 = vmatprep.subr.mxu0 0.0
  %2103 = vmatpush1.msra.mxu0 0.0
  %2104 = vmatprep.subr.mxu0 0.0
  %2105 = vmatpush1.msra.mxu0 0.0
  %2106 = vmatprep.subr.mxu0 0.0
  %2107 = vmatpush1.msra.mxu0 0.0
  %2108 = vmatprep.subr.mxu0 0.0
  %2109 = vmatpush1.msra.mxu0 0.0
  %2110 = vmatprep.subr.mxu0 0.0
  %2111 = vmatpush1.msra.mxu0 0.0
  %2112 = vmatprep.subr.mxu0 0.0
  %2113 = vmatpush1.msra.mxu0 0.0
  %2114 = vmatprep.subr.mxu0 0.0
  %2115 = vmatpush1.msra.mxu0 0.0
  %2116 = vmatprep.subr.mxu0 0.0
  %2117 = vmatpush1.msra.mxu0 0.0
  %2118 = vmatprep.subr.mxu0 0.0
  %2119 = vmatpush1.msra.mxu0 %v2006
  %2120 = vmatprep.subr.mxu0 0.0
  %2121 = vmatpush2.msra.mxu0 0.0
  %2122 = vmatprep.subr.mxu0 0.0
  %2123 = vmatpush2.msra.mxu0 0.0
  %2124 = vmatprep.subr.mxu0 0.0
  %2125 = vmatpush2.msra.mxu0 0.0
  %2126 = vmatprep.subr.mxu0 0.0
  %2127 = vmatpush2.msra.mxu0 0.0
  %2128 = vmatprep.subr.mxu0 0.0
  %2129 = vmatpush2.msra.mxu0 0.0
  %2130 = vmatprep.subr.mxu0 0.0
  %2131 = vmatpush2.msra.mxu0 0.0
  %2132 = vmatprep.subr.mxu0 0.0
  %2133 = vmatpush2.msra.mxu0 0.0
  %2134 = vmatprep.subr.mxu0 0.0
  %2135 = vmatpush2.msra.mxu0 0.0
  %2136 = vmatprep.subr.mxu0 0.0
  %2137 = vmatpush2.msra.mxu0 0.0
  %2138 = vmatprep.subr.mxu0 0.0
  %2139 = vmatpush2.msra.mxu0 0.0
  %2140 = vmatprep.subr.mxu0 0.0
  %2141 = vmatpush2.msra.mxu0 0.0
  %2142 = vmatprep.subr.mxu0 0.0
  %2143 = vmatpush2.msra.mxu0 0.0
  %2144 = vmatprep.subr.mxu0 0.0
  %2145 = vmatpush2.msra.mxu0 0.0
  %2146 = vmatprep.subr.mxu0 0.0
  %2147 = vmatpush2.msra.mxu0 0.0
  %2148 = vmatprep.subr.mxu0 0.0
  %2149 = vmatpush2.msra.mxu0 0.0
  %2150 = vmatprep.subr.mxu0 0.0
  %2151 = vmatpush2.msra.mxu0 0.0
  %2152 = vmatprep.mubr.f32.mxu0 0.0
  %2153 = vmatmul.mubr.f32.gmra.mxu0 %v2065
  %v2154 = vpop.f32.mrf.mxu0
  %v2155 = vadd.f32 %v2026, %v2154
  %v2156 = vpop.f32.mrf.mxu0
  %2157 = vmatprep.mubr.f32.mxu0 0.0
  %2158 = vmatmul.mubr.f32.gmra.mxu0 %v2068
  %v2159 = vpop.f32.mrf.mxu0
  %v2160 = vadd.f32 %v2031, %v2159
  %v2161 = vpop.f32.mrf.mxu0
  %2162 = vmatprep.mubr.f32.mxu0 0.0
  %2163 = vmatmul.mubr.f32.gmra.mxu0 %v2071
  %v2164 = vpop.f32.mrf.mxu0
  %v2165 = vadd.f32 %v2036, %v2164
  %v2166 = vpop.f32.mrf.mxu0
  %2167 = vmatprep.mubr.f32.mxu0 0.0
  %2168 = vmatmul.mubr.f32.gmra.mxu0 %v2074
  %v2169 = vpop.f32.mrf.mxu0
  %v2170 = vadd.f32 %v2041, %v2169
  %v2171 = vpop.f32.mrf.mxu0
  %2172 = vmatprep.mubr.f32.mxu0 0.0
  %2173 = vmatmul.mubr.f32.gmra.mxu0 %v2077
  %v2174 = vpop.f32.mrf.mxu0
  %v2175 = vadd.f32 %v2046, %v2174
  %v2176 = vpop.f32.mrf.mxu0
  %2177 = vmatprep.mubr.f32.mxu0 0.0
  %2178 = vmatmul.mubr.f32.gmra.mxu0 %v2080
  %v2179 = vpop.f32.mrf.mxu0
  %v2180 = vadd.f32 %v2051, %v2179
  %v2181 = vpop.f32.mrf.mxu0
  %2182 = vmatprep.mubr.f32.mxu0 0.0
  %2183 = vmatmul.mubr.f32.gmra.mxu0 %v2083
  %v2184 = vpop.f32.mrf.mxu0
  %v2185 = vadd.f32 %v2056, %v2184
  %v2186 = vpop.f32.mrf.mxu0
  %2187 = vmatprep.mubr.f32.mxu0 0.0
  %2188 = vmatmul.mubr.f32.gmra.mxu0 %v2086
  %v2189 = vpop.f32.mrf.mxu0
  %v2190 = vadd.f32 %v2061, %v2189
  %v2191 = vpop.f32.mrf.mxu0
  %2192 = vdwg.mxu0
  %v2193 = vxor.u32 %v2155, 2147483648
  %v2194 = vxor.u32 %v2160, 2147483648
  %v2195 = vxor.u32 %v2165, 2147483648
  %v2196 = vxor.u32 %v2170, 2147483648
  %v2197 = vxor.u32 %v2175, 2147483648
  %v2198 = vxor.u32 %v2180, 2147483648
  %v2199 = vxor.u32 %v2185, 2147483648
  %v2200 = vxor.u32 %v2190, 2147483648
  %v2201 = vmul.f32 %v2193, 1.442695
  %v2202 = vpow.pop %v2201
  %v2203 = vmul.f32 %v2194, 1.442695
  %v2204 = vpow.pop %v2203
  %v2205 = vmul.f32 %v2195, 1.442695
  %v2206 = vpow.pop %v2205
  %v2207 = vmul.f32 %v2196, 1.442695
  %v2208 = vpow.pop %v2207
  %v2209 = vmul.f32 %v2197, 1.442695
  %v2210 = vpow.pop %v2209
  %v2211 = vmul.f32 %v2198, 1.442695
  %v2212 = vpow.pop %v2211
  %v2213 = vmul.f32 %v2199, 1.442695
  %v2214 = vpow.pop %v2213
  %v2215 = vmul.f32 %v2200, 1.442695
  %v2216 = vpow.pop %v2215
  %v2217 = vadd.f32 %v2202, 1.0
  %v2218 = vadd.f32 %v2204, 1.0
  %v2219 = vadd.f32 %v2206, 1.0
  %v2220 = vadd.f32 %v2208, 1.0
  %v2221 = vadd.f32 %v2210, 1.0
  %v2222 = vadd.f32 %v2212, 1.0
  %v2223 = vadd.f32 %v2214, 1.0
  %v2224 = vadd.f32 %v2216, 1.0
  %v2225 = vrcp.pop %v2217
  %v2226 = vmul.f32 1.0, %v2225
  %v2227 = vrcp.pop %v2218
  %v2228 = vmul.f32 1.0, %v2227
  %v2229 = vrcp.pop %v2219
  %v2230 = vmul.f32 1.0, %v2229
  %v2231 = vrcp.pop %v2220
  %v2232 = vmul.f32 1.0, %v2231
  %v2233 = vrcp.pop %v2221
  %v2234 = vmul.f32 1.0, %v2233
  %v2235 = vrcp.pop %v2222
  %v2236 = vmul.f32 1.0, %v2235
  %v2237 = vrcp.pop %v2223
  %v2238 = vmul.f32 1.0, %v2237
  %v2239 = vrcp.pop %v2224
  %v2240 = vmul.f32 1.0, %v2239
  %v2241 = vld [vmem:[%s11] sm:$0xff]
  %v2242 = vld [vmem:[%s11 + $0x8] sm:$0xff]
  %v2243 = vld [vmem:[%s11 + $0x10] sm:$0xff]
  %v2244 = vld [vmem:[%s11 + $0x18] sm:$0xff]
  %v2245 = vld [vmem:[%s11 + $0x20] sm:$0xff]
  %v2246 = vld [vmem:[%s11 + $0x28] sm:$0xff]
  %v2247 = vld [vmem:[%s11 + $0x30] sm:$0xff]
  %v2248 = vld [vmem:[%s11 + $0x38] sm:$0xff]
  %v2249 = vld [vmem:[%s11 + $0x40] sm:$0xff]
  %v2250 = vld [vmem:[%s11 + $0x48] sm:$0xff]
  %v2251 = vld [vmem:[%s11 + $0x50] sm:$0xff]
  %v2252 = vld [vmem:[%s11 + $0x58] sm:$0xff]
  %v2253 = vld [vmem:[%s11 + $0x60] sm:$0xff]
  %v2254 = vld [vmem:[%s11 + $0x68] sm:$0xff]
  %v2255 = vld [vmem:[%s11 + $0x70] sm:$0xff]
  %v2256 = vld [vmem:[%s11 + $0x78] sm:$0xff]
  %v2257 = vld [vmem:[%s11 + $0x80] sm:$0xff]
  %v2258 = vld [vmem:[%s11 + $0x88] sm:$0xff]
  %v2259 = vld [vmem:[%s11 + $0x90] sm:$0xff]
  %v2260 = vld [vmem:[%s11 + $0x98] sm:$0xff]
  %v2261 = vld [vmem:[%s11 + $0xa0] sm:$0xff]
  %v2262 = vld [vmem:[%s11 + $0xa8] sm:$0xff]
  %v2263 = vld [vmem:[%s11 + $0xb0] sm:$0xff]
  %v2264 = vld [vmem:[%s11 + $0xb8] sm:$0xff]
  %v2265 = vld [vmem:[%s11 + $0xc0] sm:$0xff]
  %v2266 = vld [vmem:[%s11 + $0xc8] sm:$0xff]
  %v2267 = vld [vmem:[%s11 + $0xd0] sm:$0xff]
  %v2268 = vld [vmem:[%s11 + $0xd8] sm:$0xff]
  %v2269 = vld [vmem:[%s11 + $0xe0] sm:$0xff]
  %v2270 = vld [vmem:[%s11 + $0xe8] sm:$0xff]
  %v2271 = vld [vmem:[%s11 + $0xf0] sm:$0xff]
  %v2272 = vld [vmem:[%s11 + $0xf8] sm:$0xff]
  %2273 = vmatprep.subr.mxu0 %v2272
  %2274 = vmatpush1.msra.mxu0 %v2271
  %2275 = vmatprep.subr.mxu0 %v2270
  %2276 = vmatpush1.msra.mxu0 %v2269
  %2277 = vmatprep.subr.mxu0 %v2268
  %2278 = vmatpush1.msra.mxu0 %v2267
  %2279 = vmatprep.subr.mxu0 %v2266
  %2280 = vmatpush1.msra.mxu0 %v2265
  %2281 = vmatprep.subr.mxu0 %v2264
  %2282 = vmatpush1.msra.mxu0 %v2263
  %2283 = vmatprep.subr.mxu0 %v2262
  %2284 = vmatpush1.msra.mxu0 %v2261
  %2285 = vmatprep.subr.mxu0 %v2260
  %2286 = vmatpush1.msra.mxu0 %v2259
  %2287 = vmatprep.subr.mxu0 %v2258
  %2288 = vmatpush1.msra.mxu0 %v2257
  %2289 = vmatprep.subr.mxu0 %v2256
  %2290 = vmatpush1.msra.mxu0 %v2255
  %2291 = vmatprep.subr.mxu0 %v2254
  %2292 = vmatpush1.msra.mxu0 %v2253
  %2293 = vmatprep.subr.mxu0 %v2252
  %2294 = vmatpush1.msra.mxu0 %v2251
  %2295 = vmatprep.subr.mxu0 %v2250
  %2296 = vmatpush1.msra.mxu0 %v2249
  %2297 = vmatprep.subr.mxu0 %v2248
  %2298 = vmatpush1.msra.mxu0 %v2247
  %2299 = vmatprep.subr.mxu0 %v2246
  %2300 = vmatpush1.msra.mxu0 %v2245
  %2301 = vmatprep.subr.mxu0 %v2244
  %2302 = vmatpush1.msra.mxu0 %v2243
  %2303 = vmatprep.subr.mxu0 %v2242
  %2304 = vmatpush1.msra.mxu0 %v2241
  %2305 = vmatprep.subr.mxu0 0.0
  %2306 = vmatpush2.msra.mxu0 0.0
  %2307 = vmatprep.subr.mxu0 0.0
  %2308 = vmatpush2.msra.mxu0 0.0
  %2309 = vmatprep.subr.mxu0 0.0
  %2310 = vmatpush2.msra.mxu0 0.0
  %2311 = vmatprep.subr.mxu0 0.0
  %2312 = vmatpush2.msra.mxu0 0.0
  %2313 = vmatprep.subr.mxu0 0.0
  %2314 = vmatpush2.msra.mxu0 0.0
  %2315 = vmatprep.subr.mxu0 0.0
  %2316 = vmatpush2.msra.mxu0 0.0
  %2317 = vmatprep.subr.mxu0 0.0
  %2318 = vmatpush2.msra.mxu0 0.0
  %2319 = vmatprep.subr.mxu0 0.0
  %2320 = vmatpush2.msra.mxu0 0.0
  %2321 = vmatprep.subr.mxu0 0.0
  %2322 = vmatpush2.msra.mxu0 0.0
  %2323 = vmatprep.subr.mxu0 0.0
  %2324 = vmatpush2.msra.mxu0 0.0
  %2325 = vmatprep.subr.mxu0 0.0
  %2326 = vmatpush2.msra.mxu0 0.0
  %2327 = vmatprep.subr.mxu0 0.0
  %2328 = vmatpush2.msra.mxu0 0.0
  %2329 = vmatprep.subr.mxu0 0.0
  %2330 = vmatpush2.msra.mxu0 0.0
  %2331 = vmatprep.subr.mxu0 0.0
  %2332 = vmatpush2.msra.mxu0 0.0
  %2333 = vmatprep.subr.mxu0 0.0
  %2334 = vmatpush2.msra.mxu0 0.0
  %2335 = vmatprep.subr.mxu0 0.0
  %2336 = vmatpush2.msra.mxu0 0.0
  %2337 = vmatprep.mubr.f32.mxu0 0.0
  %2338 = vmatmul.mubr.f32.gmra.mxu0 %v2226
  %v2339 = vpop.f32.mrf.mxu0
  %v2340 = vadd.f32 0.0, %v2339
  %v2341 = vpop.f32.mrf.mxu0
  %v2342 = vadd.f32 0.0, %v2341
  %2343 = vmatprep.mubr.f32.mxu0 0.0
  %2344 = vmatmul.mubr.f32.gmra.mxu0 %v2228
  %v2345 = vpop.f32.mrf.mxu0
  %v2346 = vadd.f32 0.0, %v2345
  %v2347 = vpop.f32.mrf.mxu0
  %v2348 = vadd.f32 0.0, %v2347
  %2349 = vmatprep.mubr.f32.mxu0 0.0
  %2350 = vmatmul.mubr.f32.gmra.mxu0 %v2230
  %v2351 = vpop.f32.mrf.mxu0
  %v2352 = vadd.f32 0.0, %v2351
  %v2353 = vpop.f32.mrf.mxu0
  %v2354 = vadd.f32 0.0, %v2353
  %2355 = vmatprep.mubr.f32.mxu0 0.0
  %2356 = vmatmul.mubr.f32.gmra.mxu0 %v2232
  %v2357 = vpop.f32.mrf.mxu0
  %v2358 = vadd.f32 0.0, %v2357
  %v2359 = vpop.f32.mrf.mxu0
  %v2360 = vadd.f32 0.0, %v2359
  %2361 = vmatprep.mubr.f32.mxu0 0.0
  %2362 = vmatmul.mubr.f32.gmra.mxu0 %v2234
  %v2363 = vpop.f32.mrf.mxu0
  %v2364 = vadd.f32 0.0, %v2363
  %v2365 = vpop.f32.mrf.mxu0
  %v2366 = vadd.f32 0.0, %v2365
  %2367 = vmatprep.mubr.f32.mxu0 0.0
  %2368 = vmatmul.mubr.f32.gmra.mxu0 %v2236
  %v2369 = vpop.f32.mrf.mxu0
  %v2370 = vadd.f32 0.0, %v2369
  %v2371 = vpop.f32.mrf.mxu0
  %v2372 = vadd.f32 0.0, %v2371
  %2373 = vmatprep.mubr.f32.mxu0 0.0
  %2374 = vmatmul.mubr.f32.gmra.mxu0 %v2238
  %v2375 = vpop.f32.mrf.mxu0
  %v2376 = vadd.f32 0.0, %v2375
  %v2377 = vpop.f32.mrf.mxu0
  %v2378 = vadd.f32 0.0, %v2377
  %2379 = vmatprep.mubr.f32.mxu0 0.0
  %2380 = vmatmul.mubr.f32.gmra.mxu0 %v2240
  %v2381 = vpop.f32.mrf.mxu0
  %v2382 = vadd.f32 0.0, %v2381
  %v2383 = vpop.f32.mrf.mxu0
  %v2384 = vadd.f32 0.0, %v2383
  %2385 = vdwg.mxu0
  %v2386 = vmul.f32 %v1773, %v2340
  %v2387 = vmul.f32 %v1774, %v2342
  %v2388 = vmul.f32 %v1775, %v2346
  %v2389 = vmul.f32 %v1776, %v2348
  %v2390 = vmul.f32 %v1777, %v2352
  %v2391 = vmul.f32 %v1778, %v2354
  %v2392 = vmul.f32 %v1779, %v2358
  %v2393 = vmul.f32 %v1780, %v2360
  %v2394 = vmul.f32 %v1781, %v2364
  %v2395 = vmul.f32 %v1782, %v2366
  %v2396 = vmul.f32 %v1783, %v2370
  %v2397 = vmul.f32 %v1784, %v2372
  %v2398 = vmul.f32 %v1785, %v2376
  %v2399 = vmul.f32 %v1786, %v2378
  %v2400 = vmul.f32 %v1787, %v2382
  %v2401 = vmul.f32 %v1788, %v2384
  %v2402 = vadd.f32 %v2386, %v44
  %v2403 = vadd.f32 %v2387, %v45
  %v2404 = vadd.f32 %v2388, %v46
  %v2405 = vadd.f32 %v2389, %v47
  %v2406 = vadd.f32 %v2390, %v48
  %v2407 = vadd.f32 %v2391, %v49
  %v2408 = vadd.f32 %v2392, %v50
  %v2409 = vadd.f32 %v2393, %v51
  %v2410 = vadd.f32 %v2394, %v52
  %v2411 = vadd.f32 %v2395, %v53
  %v2412 = vadd.f32 %v2396, %v54
  %v2413 = vadd.f32 %v2397, %v55
  %v2414 = vadd.f32 %v2398, %v56
  %v2415 = vadd.f32 %v2399, %v57
  %v2416 = vadd.f32 %v2400, %v58
  %v2417 = vadd.f32 %v2401, %v59
  %v2418 = vmax.f32 %v2402, 0.0
  %v2419 = vmax.f32 %v2403, 0.0
  %v2420 = vmax.f32 %v2404, 0.0
  %v2421 = vmax.f32 %v2405, 0.0
  %v2422 = vmax.f32 %v2406, 0.0
  %v2423 = vmax.f32 %v2407, 0.0
  %v2424 = vmax.f32 %v2408, 0.0
  %v2425 = vmax.f32 %v2409, 0.0
  %v2426 = vmax.f32 %v2410, 0.0
  %v2427 = vmax.f32 %v2411, 0.0
  %v2428 = vmax.f32 %v2412, 0.0
  %v2429 = vmax.f32 %v2413, 0.0
  %v2430 = vmax.f32 %v2414, 0.0
  %v2431 = vmax.f32 %v2415, 0.0
  %v2432 = vmax.f32 %v2416, 0.0
  %v2433 = vmax.f32 %v2417, 0.0
  %2434 = vst [vmem:[%s13] sm:$0xff] %v2418
  %2435 = vst [vmem:[%s13 + $0x8] sm:$0xff] %v2419
  %2436 = vst [vmem:[%s13 + $0x10] sm:$0xff] %v2420
  %2437 = vst [vmem:[%s13 + $0x18] sm:$0xff] %v2421
  %2438 = vst [vmem:[%s13 + $0x20] sm:$0xff] %v2422
  %2439 = vst [vmem:[%s13 + $0x28] sm:$0xff] %v2423
  %2440 = vst [vmem:[%s13 + $0x30] sm:$0xff] %v2424
  %2441 = vst [vmem:[%s13 + $0x38] sm:$0xff] %v2425
  %2442 = vst [vmem:[%s13 + $0x40] sm:$0xff] %v2426
  %2443 = vst [vmem:[%s13 + $0x48] sm:$0xff] %v2427
  %2444 = vst [vmem:[%s13 + $0x50] sm:$0xff] %v2428
  %2445 = vst [vmem:[%s13 + $0x58] sm:$0xff] %v2429
  %2446 = vst [vmem:[%s13 + $0x60] sm:$0xff] %v2430
  %2447 = vst [vmem:[%s13 + $0x68] sm:$0xff] %v2431
  %2448 = vst [vmem:[%s13 + $0x70] sm:$0xff] %v2432
  %2449 = vst [vmem:[%s13 + $0x78] sm:$0xff] %v2433
  // Predicated region
  $region54: #{block_forward.1} parent=0 // pred_check
    _
  $region55: #{block_forward.1} parent=0 // pred_check_branch
    %2451 = sbr.rel (0) target = $region57
  $region56: #{block_forward.1} parent=0 // pred_region
    _
  $region57: #{block_forward.1} parent=0 // pred_fallthru
    _
  // Predicated region
  $region58: #{block_forward.1} parent=0 // pred_check
    _
  $region59: #{block_forward.1} parent=0 // pred_check_branch
    %2453 = sbr.rel (0) target = $region61
  $region60: #{block_forward.1} parent=0 // pred_region
    _
  $region61: #{block_forward.1} parent=0 // pred_fallthru
    _

</llo_original>
